<compile_context>
chip_gen: v7x
topology: tpu7x:2x2x1
jax: 0.10.0
libtpu: 0.0.40
codegen_flags: <defaults>
</compile_context>

<pallas_src>
import functools

import jax
import jax.numpy as jnp
import numpy as np
from jax.experimental import pallas as pl
from jax.experimental.pallas import tpu as pltpu

EPS = 1e-5  # nn.BatchNorm2d default eps


# ----------------------------- Pallas kernels -----------------------------------
def _deconv_stats_kernel(p_ref, w_ref, v_ref, s1_ref, m2_ref, *, cout, s2):
    """Stats-only pass: fused GEMM + masked per-phase BN partials for one M-tile.

    p_ref : (KC2, TILE_M)   phase-decomposed patches (bf16 or f32)
    w_ref : (C2s, KC2)      fused (ln|gate) sub-pixel weights (VMEM resident)
    v_ref : (s2, TILE_M)    per-column validity of each output phase (0/1, f32)
    s1_ref: (1, C2s, 1)     per-tile per-fused-row masked sum(y)
    m2_ref: (1, C2s, 1)     per-tile per-fused-row masked sum((y - tile_mean)^2)
    """
    y = jnp.dot(w_ref[...], p_ref[...], preferred_element_type=jnp.float32)  # (C2s, T)
    v = v_ref[...]                                                           # (s2, T)
    t = v.shape[1]
    # Expand the s2 phase-validity rows to all fused rows (which, phase, co):
    rows = [jnp.broadcast_to(v[p:p + 1, :], (cout, t)) for p in range(s2)]
    mhalf = jnp.concatenate(rows, axis=0)                 # (s2*cout, T)
    mask = jnp.concatenate([mhalf, mhalf], axis=0)        # (C2s, T), values in {0,1}
    cnt = jnp.sum(mask, axis=1, keepdims=True)
    s1 = jnp.sum(y * mask, axis=1, keepdims=True)
    mu = s1 / jnp.maximum(cnt, 1.0)
    d = (y - mu) * mask
    s1_ref[0] = s1
    m2_ref[0] = jnp.sum(d * d, axis=1, keepdims=True)


def _deconv_bn_gate_kernel(p_ref, w_ref, scale_ref, shift_ref, out_ref, *, half):
    """Recompute fused GEMM, apply folded BN affine, sigmoid gate, lane-dense store.

    p_ref    : (KC2, TILE_M)
    w_ref    : (C2s, KC2)   VMEM resident
    scale_ref: (C2s, 1)     gamma*rsqrt(var+eps)   (ones      if not is_bn)
    shift_ref: (C2s, 1)     beta - mean*scale      (conv bias if not is_bn)
    out_ref  : (half, TILE_M)  ln_bn * sigmoid(gate_bn), half = s*s*Cout
    """
    y = jnp.dot(w_ref[...], p_ref[...], preferred_element_type=jnp.float32)
    z = y * scale_ref[...] + shift_ref[...]
    out_ref[...] = (z[:half, :] * jax.nn.sigmoid(z[half:, :])).astype(out_ref.dtype)


# ------------------------------- helpers -----------------------------------------
def _round_up(v, m):
    return (v + m - 1) // m * m


def _cdiv(a, b):
    return -(-a // b)


def _pick_tile_m(m_cols, requested, kc2, half, c2s, s2, in_item, out_item):
    """Tile the M axis: big (>=512, mult of 512), >=2 grid steps, VMEM-safe."""
    t = max(512, _round_up(int(requested), 512))
    # Keep >=2 grid steps when possible so both v7x TensorCores get work.
    t = min(t, max(512, _round_up(_cdiv(m_cols, 2), 512)))
    budget = 40 * 1024 * 1024            # per-step, double-buffered (v7x: 64 MiB phys)
    resident = c2s * kc2 * in_item + 2 * c2s * 4
    while t > 512:
        stream = kc2 * t * in_item + max(s2 * t * 4, half * t * out_item)
        if 2 * stream + resident <= budget:
            break
        t -= 512
    return t


# ------------------------------- wrapper -----------------------------------------
@functools.partial(
    jax.jit,
    static_argnames=("kernel_size", "stride", "padding", "is_bn", "tile_m",
                     "matmul_dtype", "out_dtype"),
)
def speech_deconv(x, params, *, kernel_size, stride, padding, is_bn=True,
                  tile_m=2048, matmul_dtype=jnp.bfloat16, out_dtype=jnp.float32):
    """x: (N, Cin, H, W) float32, NCHW (PyTorch convention)."""
    N, Cin, H, W = x.shape
    K, s, pd = kernel_size, stride, padding
    Cout = params["w_ln"].shape[1]

    OH = (H - 1) * s - 2 * pd + K
    OW = (W - 1) * s - 2 * pd + K
    assert pd >= 0 and OH > 0 and OW > 0
    M_out = N * OH * OW

    Kq = _cdiv(K, s)                 # sub-kernel taps per spatial dim
    s2 = s * s
    Qh, Qw = H + Kq - 1, W + Kq - 1  # per-phase conv grid (covers all needed positions)
    Mq = N * Qh * Qw                 # GEMM columns (s^2 fewer than N*OH*OW)
    KC2 = Kq * Kq * Cin              # GEMM contraction (no dilation zeros)
    C2s = 2 * s2 * Cout              # fused rows: (which in {ln,gate}, ph, pw, co)
    half = s2 * Cout

    in_item = int(np.dtype(matmul_dtype).itemsize)
    out_item = int(np.dtype(out_dtype).itemsize)
    TILE_M = _pick_tile_m(Mq, tile_m, KC2, half, C2s, s2, in_item, out_item)
    num_tiles = _cdiv(Mq, TILE_M)
    Mp = num_tiles * TILE_M

    # ---- glue (fused under jit): pad input, ceil(K/s)-window im2col of the ORIGINAL x
    x32 = x.astype(jnp.float32)
    pe = Kq - 1
    xp = jnp.pad(x32, ((0, 0), (0, 0), (pe, pe), (pe, pe)))
    cols = [xp[:, :, uh:uh + Qh, uw:uw + Qw] for uh in range(Kq) for uw in range(Kq)]
    patches = jnp.stack(cols, axis=0)                         # (Kq^2, N, Cin, Qh, Qw)
    patches = patches.transpose(0, 2, 1, 3, 4).reshape(KC2, Mq)
    patches = jnp.pad(patches, ((0, 0), (0, Mp - Mq))).astype(matmul_dtype)

    # ---- sub-pixel weights: (Cin,Cout,K,K) -> (s*s*Cout, Kq*Kq*Cin) per branch -----
    Kp = Kq * s

    def subpix_w(w):
        wp = jnp.pad(w.astype(jnp.float32), ((0, 0), (0, 0), (0, Kp - K), (0, Kp - K)))
        # kh = m*s + ph ; tap u = Kq-1-m  (flip bakes in the transposed-conv reversal)
        wv = wp.reshape(Cin, Cout, Kq, s, Kq, s)[:, :, ::-1, :, ::-1, :]
        # axes now (ci, co, uh, ph, uw, pw) -> (ph, pw, co, uh, uw, ci)
        return wv.transpose(3, 5, 1, 2, 4, 0).reshape(half, KC2)

    w_fused = jnp.concatenate([subpix_w(params["w_ln"]), subpix_w(params["w_gate"])],
                              axis=0).astype(matmul_dtype)    # (C2s, KC2)

    # ---- per-column validity of each output phase (cropped positions excluded) ----
    oh_full = jnp.arange(s)[:, None] + s * jnp.arange(Qh)[None, :]   # (s, Qh)
    ow_full = jnp.arange(s)[:, None] + s * jnp.arange(Qw)[None, :]   # (s, Qw)
    vh = ((oh_full >= pd) & (oh_full < pd + OH)).astype(jnp.float32)
    vw = ((ow_full >= pd) & (ow_full < pd + OW)).astype(jnp.float32)
    v4 = vh[:, None, :, None] * vw[None, :, None, :]                 # (s, s, Qh, Qw)
    vmat = jnp.broadcast_to(v4[:, :, None, :, :], (s, s, N, Qh, Qw)).reshape(s2, Mq)
    vmat = jnp.pad(vmat, ((0, 0), (0, Mp - Mq)))                     # (s2, Mp) f32

    cparams = pltpu.CompilerParams(
        dimension_semantics=("parallel",),      # v7x megacore splits M tiles across TCs
        vmem_limit_bytes=48 * 1024 * 1024,      # < 64 MiB v7x physical; plenty on v5e/v6e
    )

    # ---- phase 1 (is_bn only): stats-only pass, grouped-Chan merge in tiny XLA -----
    if is_bn:
        tile_s1, tile_m2 = pl.pallas_call(
            functools.partial(_deconv_stats_kernel, cout=Cout, s2=s2),
            out_shape=(jax.ShapeDtypeStruct((num_tiles, C2s, 1), jnp.float32),
                       jax.ShapeDtypeStruct((num_tiles, C2s, 1), jnp.float32)),
            grid=(num_tiles,),
            in_specs=[pl.BlockSpec((KC2, TILE_M), lambda i: (0, i)),
                      pl.BlockSpec((C2s, KC2), lambda i: (0, 0)),
                      pl.BlockSpec((s2, TILE_M), lambda i: (0, i))],
            out_specs=(pl.BlockSpec((1, C2s, 1), lambda i: (i, 0, 0)),
                       pl.BlockSpec((1, C2s, 1), lambda i: (i, 0, 0))),
            compiler_params=cparams,
            cost_estimate=pl.CostEstimate(
                flops=2 * Mp * KC2 * C2s + 6 * C2s * Mp,
                transcendentals=0,
                bytes_accessed=(KC2 * Mp * in_item + C2s * KC2 * in_item
                                + s2 * Mp * 4 + 2 * num_tiles * C2s * 4)),
        )(patches, w_fused, vmat)

        # per-(tile, phase) valid counts (exact integers, same values as in-kernel)
        cnt_tp = vmat.reshape(s2, num_tiles, TILE_M).sum(axis=-1)        # (s2, T)
        n_g = cnt_tp.T[:, None, :, None]                                  # (T, 1, s2, 1)
        sum_g = tile_s1[:, :, 0].reshape(num_tiles, 2, s2, Cout)
        m2_g = tile_m2[:, :, 0].reshape(num_tiles, 2, s2, Cout)
        inv_m = 1.0 / float(M_out)
        mean_c = jnp.sum(sum_g, axis=(0, 2)) * inv_m                      # (2, Cout)
        mu_g = sum_g / jnp.maximum(n_g, 1.0)
        var_c = (jnp.sum(m2_g, axis=(0, 2))
                 + jnp.sum(n_g * jnp.square(mu_g - mean_c[None, :, None, :]),
                           axis=(0, 2))) * inv_m
        var_c = jnp.maximum(var_c, 0.0)

        gamma = jnp.stack([params["g_ln"], params["g_gate"]]).astype(jnp.float32)
        beta = jnp.stack([params["beta_ln"], params["beta_gate"]]).astype(jnp.float32)
        scale_c = gamma * jax.lax.rsqrt(var_c + EPS)                      # (2, Cout)
        shift_c = beta - mean_c * scale_c
        # Conv bias is skipped entirely: it cancels exactly under mean subtraction.
    else:
        bias = jnp.stack([params["b_ln"], params["b_gate"]]).astype(jnp.float32)
        scale_c = jnp.ones((2, Cout), jnp.float32)
        shift_c = bias

    scale = jnp.broadcast_to(scale_c[:, None, :], (2, s2, Cout)).reshape(C2s, 1)
    shift = jnp.broadcast_to(shift_c[:, None, :], (2, s2, Cout)).reshape(C2s, 1)

    # ---- phase 2: recompute fused GEMM, BN FMA, sigmoid gate, lane-dense store -----
    out_flat = pl.pallas_call(
        functools.partial(_deconv_bn_gate_kernel, half=half),
        out_shape=jax.ShapeDtypeStruct((half, Mp), out_dtype),
        grid=(num_tiles,),
        in_specs=[pl.BlockSpec((KC2, TILE_M), lambda i: (0, i)),
                  pl.BlockSpec((C2s, KC2), lambda i: (0, 0)),
                  pl.BlockSpec((C2s, 1), lambda i: (0, 0)),
                  pl.BlockSpec((C2s, 1), lambda i: (0, 0))],
        out_specs=pl.BlockSpec((half, TILE_M), lambda i: (0, i)),
        compiler_params=cparams,
        cost_estimate=pl.CostEstimate(
            flops=2 * Mp * KC2 * C2s + 4 * C2s * Mp,
            transcendentals=half * Mp,
            bytes_accessed=(KC2 * Mp * in_item + C2s * KC2 * in_item
                            + 2 * C2s * 4 + half * Mp * out_item)),
    )(patches, w_fused, scale, shift)

    # ---- glue: phase pixel-shuffle + crop -> NCHW ----------------------------------
    z = out_flat[:, :Mq].reshape(s, s, Cout, N, Qh, Qw)
    z = z.transpose(3, 2, 4, 0, 5, 1).reshape(N, Cout, Qh * s, Qw * s)
    return z[:, :, pd:pd + OH, pd:pd + OW]


# ---------------------------- pure-JAX reference --------------------------------
def ref_forward(x, params, *, kernel_size, stride, padding, is_bn=True):
    K, s, pd = kernel_size, stride, padding

    def convT(x, w, b):
        wconv = jnp.transpose(w[:, :, ::-1, ::-1], (1, 0, 2, 3))        # (Cout,Cin,K,K)
        y = jax.lax.conv_general_dilated(
            x, wconv, window_strides=(1, 1),
            padding=[(K - 1 - pd, K - 1 - pd)] * 2,
            lhs_dilation=(s, s),
            dimension_numbers=("NCHW", "OIHW", "NCHW"),
            precision=jax.lax.Precision.HIGHEST)
        return y + b[None, :, None, None]

    def bn(y, g, b):
        mu = jnp.mean(y, axis=(0, 2, 3), keepdims=True)
        var = jnp.mean((y - mu) ** 2, axis=(0, 2, 3), keepdims=True)
        return (y - mu) * jax.lax.rsqrt(var + EPS) * g[None, :, None, None] \
            + b[None, :, None, None]

    ln = convT(x, params["w_ln"], params["b_ln"])
    gt = convT(x, params["w_gate"], params["b_gate"])
    if is_bn:
        ln = bn(ln, params["g_ln"], params["beta_ln"])
        gt = bn(gt, params["g_gate"], params["beta_gate"])
    return ln * jax.nn.sigmoid(gt)


if __name__ == "__main__":
    N, Cin, Cout, H, W = 2, 4, 8, 16, 16
    K, stride, pad = 3, 2, 1

    key = jax.random.PRNGKey(0)
    ks = jax.random.split(key, 9)
    bound = 1.0 / np.sqrt(Cin * K * K)      # mimic PyTorch default uniform init scale
    params = {
        "w_ln":      jax.random.uniform(ks[0], (Cin, Cout, K, K), jnp.float32, -bound, bound),
        "b_ln":      jax.random.uniform(ks[1], (Cout,), jnp.float32, -bound, bound),
        "w_gate":    jax.random.uniform(ks[2], (Cin, Cout, K, K), jnp.float32, -bound, bound),
        "b_gate":    jax.random.uniform(ks[3], (Cout,), jnp.float32, -bound, bound),
        "g_ln":      jnp.ones((Cout,), jnp.float32),   # BatchNorm2d default gamma/beta
        "beta_ln":   jnp.zeros((Cout,), jnp.float32),
        "g_gate":    jnp.ones((Cout,), jnp.float32),
        "beta_gate": jnp.zeros((Cout,), jnp.float32),
    }
    x = jax.random.normal(ks[8], (N, Cin, H, W), jnp.float32)

    OH = (H - 1) * stride - 2 * pad + K
    OW = (W - 1) * stride - 2 * pad + K
    ref = jax.block_until_ready(
        ref_forward(x, params, kernel_size=K, stride=stride, padding=pad, is_bn=True))

    # Production config: bf16 MXU inputs, f32 accumulation + f32 BN/sigmoid math.
    out_bf16 = jax.block_until_ready(
        speech_deconv(x, params, kernel_size=K, stride=stride, padding=pad, is_bn=True))
    assert out_bf16.shape == ref.shape == (N, Cout, OH, OW)
    np.testing.assert_allclose(np.asarray(out_bf16), np.asarray(ref), rtol=2e-2, atol=2e-2)

    # f32 MXU inputs: tight-tolerance structural check against the f32 reference.
    out_f32 = jax.block_until_ready(
        speech_deconv(x, params, kernel_size=K, stride=stride, padding=pad, is_bn=True,
                      matmul_dtype=jnp.float32))
    np.testing.assert_allclose(np.asarray(out_f32), np.asarray(ref), rtol=5e-3, atol=5e-3)

    # bf16 output store (halves the phase-2 write stream when downstream accepts bf16).
    out_b16o = jax.block_until_ready(
        speech_deconv(x, params, kernel_size=K, stride=stride, padding=pad, is_bn=True,
                      out_dtype=jnp.bfloat16))
    np.testing.assert_allclose(np.asarray(out_b16o.astype(jnp.float32)), np.asarray(ref),
                               rtol=3e-2, atol=3e-2)

    # is_bn=False path (stats pass skipped; conv bias folded into the phase-2 shift).
    ref_nobn = jax.block_until_ready(
        ref_forward(x, params, kernel_size=K, stride=stride, padding=pad, is_bn=False))
    out_nobn = jax.block_until_ready(
        speech_deconv(x, params, kernel_size=K, stride=stride, padding=pad, is_bn=False,
                      matmul_dtype=jnp.float32))
    np.testing.assert_allclose(np.asarray(out_nobn), np.asarray(ref_nobn), rtol=5e-3, atol=5e-3)

    print("KERNEL_OK")
</pallas_src>

<mosaic_0001>
module attributes {stable_mosaic.version = 11 : i64} {
  func.func @_deconv_stats_kernel(%arg0: i32, %arg1: memref<16x512xbf16, #tpu.memory_space<vmem>>, %arg2: memref<64x16xbf16, #tpu.memory_space<vmem>>, %arg3: memref<4x512xf32, #tpu.memory_space<vmem>>, %arg4: memref<1x64x1xf32, #tpu.memory_space<vmem>>, %arg5: memref<1x64x1xf32, #tpu.memory_space<vmem>>) attributes {dimension_semantics = [#tpu.dimension_semantics<parallel>], iteration_bounds = array<i64: 2>, scalar_prefetch = 0 : i64, scratch_operands = 0 : i64, tpu.core_type = #tpu.core_type<tc>, window_params = [{transform_indices = @transform_0, window_bounds = array<i64: 16, 512>}, {pipeline_mode = #tpu.pipeline_mode<synchronous>, transform_indices = @transform_1, window_bounds = array<i64: 64, 16>}, {transform_indices = @transform_2, window_bounds = array<i64: 4, 512>}, {transform_indices = @transform_3, window_bounds = array<i64: 1, 64, 1>}, {transform_indices = @transform_4, window_bounds = array<i64: 1, 64, 1>}]} {
    %c0 = arith.constant 0 : index
    %c0_0 = arith.constant 0 : index
    %0 = vector.load %arg2[%c0, %c0_0] : memref<64x16xbf16, #tpu.memory_space<vmem>>, vector<64x16xbf16>
    %c0_1 = arith.constant 0 : index
    %c0_2 = arith.constant 0 : index
    %1 = vector.load %arg1[%c0_1, %c0_2] : memref<16x512xbf16, #tpu.memory_space<vmem>>, vector<16x512xbf16>
    %cst = arith.constant dense<0.000000e+00> : vector<64x512xf32>
    %2 = tpu.matmul %0, %1, %cst {dimension_numbers = #tpu.dot_dimension_numbers<[1], [0], [0], [1], [0, 0, 1, 1], [], []>} : vector<64x16xbf16>, vector<16x512xbf16>, vector<64x512xf32> -> vector<64x512xf32>
    %c0_3 = arith.constant 0 : index
    %c0_4 = arith.constant 0 : index
    %3 = vector.load %arg3[%c0_3, %c0_4] : memref<4x512xf32, #tpu.memory_space<vmem>>, vector<4x512xf32>
    %4 = vector.extract_strided_slice %3 {offsets = [0, 0], sizes = [1, 512], strides = [1, 1]} : vector<4x512xf32> to vector<1x512xf32>
    %5 = vector.shape_cast %4 : vector<1x512xf32> to vector<1x512xf32>
    %6 = vector.broadcast %5 : vector<1x512xf32> to vector<8x512xf32>
    %7 = vector.extract_strided_slice %3 {offsets = [1, 0], sizes = [1, 512], strides = [1, 1]} : vector<4x512xf32> to vector<1x512xf32>
    %8 = vector.shape_cast %7 : vector<1x512xf32> to vector<1x512xf32>
    %9 = vector.broadcast %8 : vector<1x512xf32> to vector<8x512xf32>
    %10 = vector.extract_strided_slice %3 {offsets = [2, 0], sizes = [1, 512], strides = [1, 1]} : vector<4x512xf32> to vector<1x512xf32>
    %11 = vector.shape_cast %10 : vector<1x512xf32> to vector<1x512xf32>
    %12 = vector.broadcast %11 : vector<1x512xf32> to vector<8x512xf32>
    %13 = vector.extract_strided_slice %3 {offsets = [3, 0], sizes = [1, 512], strides = [1, 1]} : vector<4x512xf32> to vector<1x512xf32>
    %14 = vector.shape_cast %13 : vector<1x512xf32> to vector<1x512xf32>
    %15 = vector.broadcast %14 : vector<1x512xf32> to vector<8x512xf32>
    %16 = tpu.concatenate %6, %9, %12, %15 in 0 : vector<8x512xf32>, vector<8x512xf32>, vector<8x512xf32>, vector<8x512xf32> -> vector<32x512xf32>
    %17 = tpu.concatenate %16, %16 in 0 : vector<32x512xf32>, vector<32x512xf32> -> vector<64x512xf32>
    %cst_5 = arith.constant dense<0.000000e+00> : vector<64xf32>
    %18 = vector.multi_reduction <add>, %17, %cst_5 [1] : vector<64x512xf32> to vector<64xf32>
    %19 = vector.shape_cast %18 : vector<64xf32> to vector<64x1xf32>
    %20 = arith.mulf %2, %17 : vector<64x512xf32>
    %cst_6 = arith.constant dense<0.000000e+00> : vector<64xf32>
    %21 = vector.multi_reduction <add>, %20, %cst_6 [1] : vector<64x512xf32> to vector<64xf32>
    %22 = vector.shape_cast %21 : vector<64xf32> to vector<64x1xf32>
    %cst_7 = arith.constant 1.000000e+00 : f32
    %23 = vector.broadcast %cst_7 : f32 to vector<64x1xf32>
    %24 = arith.maximumf %19, %23 : vector<64x1xf32>
    %25 = arith.divf %22, %24 : vector<64x1xf32>
    %26 = vector.broadcast %25 : vector<64x1xf32> to vector<64x512xf32>
    %27 = arith.subf %2, %26 : vector<64x512xf32>
    %28 = arith.mulf %27, %17 : vector<64x512xf32>
    %c0_8 = arith.constant 0 : index
    %c0_9 = arith.constant 0 : index
    %c0_10 = arith.constant 0 : index
    %29 = vector.load %arg4[%c0_8, %c0_9, %c0_10] : memref<1x64x1xf32, #tpu.memory_space<vmem>>, vector<1x64x1xf32>
    %30 = vector.shape_cast %29 : vector<1x64x1xf32> to vector<64x1xf32>
    %31 = vector.shape_cast %22 : vector<64x1xf32> to vector<1x64x1xf32>
    tpu.vector_store %arg4[%c0_8, %c0_9, %c0_10], %31 {strides = array<i32>} : memref<1x64x1xf32, #tpu.memory_space<vmem>>, vector<1x64x1xf32>,
    %32 = arith.mulf %28, %28 : vector<64x512xf32>
    %cst_11 = arith.constant dense<0.000000e+00> : vector<64xf32>
    %33 = vector.multi_reduction <add>, %32, %cst_11 [1] : vector<64x512xf32> to vector<64xf32>
    %34 = vector.shape_cast %33 : vector<64xf32> to vector<64x1xf32>
    %c0_12 = arith.constant 0 : index
    %c0_13 = arith.constant 0 : index
    %c0_14 = arith.constant 0 : index
    %35 = vector.load %arg5[%c0_12, %c0_13, %c0_14] : memref<1x64x1xf32, #tpu.memory_space<vmem>>, vector<1x64x1xf32>
    %36 = vector.shape_cast %35 : vector<1x64x1xf32> to vector<64x1xf32>
    %37 = vector.shape_cast %34 : vector<64x1xf32> to vector<1x64x1xf32>
    tpu.vector_store %arg5[%c0_12, %c0_13, %c0_14], %37 {strides = array<i32>} : memref<1x64x1xf32, #tpu.memory_space<vmem>>, vector<1x64x1xf32>,
    return
  }
  func.func @transform_0(%arg0: i32) -> (i32, i32) {
    %c0_i32 = arith.constant 0 : i32
    %c0_i32_0 = arith.constant 0 : i32
    return %c0_i32, %arg0 : i32, i32
  }
  func.func @transform_1(%arg0: i32) -> (i32, i32) {
    %c0_i32 = arith.constant 0 : i32
    %c0_i32_0 = arith.constant 0 : i32
    %c0_i32_1 = arith.constant 0 : i32
    return %c0_i32, %c0_i32_0 : i32, i32
  }
  func.func @transform_2(%arg0: i32) -> (i32, i32) {
    %c0_i32 = arith.constant 0 : i32
    %c0_i32_0 = arith.constant 0 : i32
    return %c0_i32, %arg0 : i32, i32
  }
  func.func @transform_3(%arg0: i32) -> (i32, i32, i32) {
    %c0_i32 = arith.constant 0 : i32
    %c0_i32_0 = arith.constant 0 : i32
    %c0_i32_1 = arith.constant 0 : i32
    return %arg0, %c0_i32, %c0_i32_0 : i32, i32, i32
  }
  func.func @transform_4(%arg0: i32) -> (i32, i32, i32) {
    %c0_i32 = arith.constant 0 : i32
    %c0_i32_0 = arith.constant 0 : i32
    %c0_i32_1 = arith.constant 0 : i32
    return %arg0, %c0_i32, %c0_i32_0 : i32, i32, i32
  }
}

module attributes {stable_mosaic.version = 11 : i64} {
  func.func @_deconv_bn_gate_kernel(%arg0: i32, %arg1: memref<16x512xbf16, #tpu.memory_space<vmem>>, %arg2: memref<64x16xbf16, #tpu.memory_space<vmem>>, %arg3: memref<64x1xf32, #tpu.memory_space<vmem>>, %arg4: memref<64x1xf32, #tpu.memory_space<vmem>>, %arg5: memref<32x512xf32, #tpu.memory_space<vmem>>) attributes {dimension_semantics = [#tpu.dimension_semantics<parallel>], iteration_bounds = array<i64: 2>, scalar_prefetch = 0 : i64, scratch_operands = 0 : i64, tpu.core_type = #tpu.core_type<tc>, window_params = [{transform_indices = @transform_0, window_bounds = array<i64: 16, 512>}, {pipeline_mode = #tpu.pipeline_mode<synchronous>, transform_indices = @transform_1, window_bounds = array<i64: 64, 16>}, {pipeline_mode = #tpu.pipeline_mode<synchronous>, transform_indices = @transform_2, window_bounds = array<i64: 64, 1>}, {pipeline_mode = #tpu.pipeline_mode<synchronous>, transform_indices = @transform_3, window_bounds = array<i64: 64, 1>}, {transform_indices = @transform_4, window_bounds = array<i64: 32, 512>}]} {
    %c0 = arith.constant 0 : index
    %c0_0 = arith.constant 0 : index
    %0 = vector.load %arg2[%c0, %c0_0] : memref<64x16xbf16, #tpu.memory_space<vmem>>, vector<64x16xbf16>
    %c0_1 = arith.constant 0 : index
    %c0_2 = arith.constant 0 : index
    %1 = vector.load %arg1[%c0_1, %c0_2] : memref<16x512xbf16, #tpu.memory_space<vmem>>, vector<16x512xbf16>
    %cst = arith.constant dense<0.000000e+00> : vector<64x512xf32>
    %2 = tpu.matmul %0, %1, %cst {dimension_numbers = #tpu.dot_dimension_numbers<[1], [0], [0], [1], [0, 0, 1, 1], [], []>} : vector<64x16xbf16>, vector<16x512xbf16>, vector<64x512xf32> -> vector<64x512xf32>
    %c0_3 = arith.constant 0 : index
    %c0_4 = arith.constant 0 : index
    %3 = vector.load %arg3[%c0_3, %c0_4] : memref<64x1xf32, #tpu.memory_space<vmem>>, vector<64x1xf32>
    %4 = vector.broadcast %3 : vector<64x1xf32> to vector<64x512xf32>
    %5 = arith.mulf %2, %4 : vector<64x512xf32>
    %c0_5 = arith.constant 0 : index
    %c0_6 = arith.constant 0 : index
    %6 = vector.load %arg4[%c0_5, %c0_6] : memref<64x1xf32, #tpu.memory_space<vmem>>, vector<64x1xf32>
    %7 = vector.broadcast %6 : vector<64x1xf32> to vector<64x512xf32>
    %8 = arith.addf %5, %7 : vector<64x512xf32>
    %9 = vector.extract_strided_slice %8 {offsets = [0, 0], sizes = [32, 512], strides = [1, 1]} : vector<64x512xf32> to vector<32x512xf32>
    %10 = vector.extract_strided_slice %8 {offsets = [32, 0], sizes = [32, 512], strides = [1, 1]} : vector<64x512xf32> to vector<32x512xf32>
    %11 = arith.negf %10 : vector<32x512xf32>
    %12 = math.exp %11 : vector<32x512xf32>
    %cst_7 = arith.constant 1.000000e+00 : f32
    %13 = vector.broadcast %cst_7 : f32 to vector<32x512xf32>
    %14 = arith.addf %13, %12 : vector<32x512xf32>
    %15 = arith.divf %13, %14 : vector<32x512xf32>
    %16 = arith.mulf %9, %15 : vector<32x512xf32>
    %c0_8 = arith.constant 0 : index
    %c0_9 = arith.constant 0 : index
    %17 = vector.load %arg5[%c0_8, %c0_9] : memref<32x512xf32, #tpu.memory_space<vmem>>, vector<32x512xf32>
    tpu.vector_store %arg5[%c0_8, %c0_9], %16 {strides = array<i32>} : memref<32x512xf32, #tpu.memory_space<vmem>>, vector<32x512xf32>,
    return
  }
  func.func @transform_0(%arg0: i32) -> (i32, i32) {
    %c0_i32 = arith.constant 0 : i32
    %c0_i32_0 = arith.constant 0 : i32
    return %c0_i32, %arg0 : i32, i32
  }
  func.func @transform_1(%arg0: i32) -> (i32, i32) {
    %c0_i32 = arith.constant 0 : i32
    %c0_i32_0 = arith.constant 0 : i32
    %c0_i32_1 = arith.constant 0 : i32
    return %c0_i32, %c0_i32_0 : i32, i32
  }
  func.func @transform_2(%arg0: i32) -> (i32, i32) {
    %c0_i32 = arith.constant 0 : i32
    %c0_i32_0 = arith.constant 0 : i32
    %c0_i32_1 = arith.constant 0 : i32
    return %c0_i32, %c0_i32_0 : i32, i32
  }
  func.func @transform_3(%arg0: i32) -> (i32, i32) {
    %c0_i32 = arith.constant 0 : i32
    %c0_i32_0 = arith.constant 0 : i32
    %c0_i32_1 = arith.constant 0 : i32
    return %c0_i32, %c0_i32_0 : i32, i32
  }
  func.func @transform_4(%arg0: i32) -> (i32, i32) {
    %c0_i32 = arith.constant 0 : i32
    %c0_i32_0 = arith.constant 0 : i32
    return %c0_i32, %arg0 : i32, i32
  }
}

</mosaic_0001>

<llo_original>
// kernel: speech_deconv.2
$region0: #{speech_deconv.2}
  #allocation0 [shape = 'u32[]', space=smem, size = 0x4, offset = 0x4, fixed_abs, tag = 'smem constant byte address 0x4 - core index']
  #allocation1 [shape = 'u32[144,128]{1,0:T(1,128)}', space=vmem, size = 0x12000, scoped, tag = 'internal scratch']
  %s0 = inlined_call_operand.vmem [shape: bf16[16,1024], index: 0, kind: input, shape index: {}]
  %s1 = inlined_call_operand.vmem [shape: bf16[64,16], index: 1, kind: input, shape index: {}]
  %s2 = inlined_call_operand.vmem [shape: f32[4,1024], index: 2, kind: input, shape index: {}]
  %s3 = inlined_call_operand.vmem [shape: f32[2,64,1], index: 3, kind: output, shape index: {0}]
  %s4 = inlined_call_operand.vmem [shape: f32[2,64,1], index: 4, kind: output, shape index: {1}]
  %5 = xla_tuple %s3, %s4
  %s6 = sld [smem:[#allocation0]]
  $region76: #{speech_deconv.2} parent=0
    _
  %s8 = ssub.s32 1, %s6
  %s9 = scalar_select 0, %s8, %s6
  $region1: #{speech_deconv.2} parent=0
    #allocation2 [shape = 'u8[32768]{0}', space=vmem, size = 0x8000, scoped, tag = 'input window, operand 0']
    loop: start=0, step=1, limit=4
    $region2: #{speech_deconv.2} parent=1 // loop_pre_header
      _
    $region3: #{speech_deconv.2} parent=1 // loop_header
      %s11 = sphi 0, %s15
      %p12 = scmp.ge.s32.totalorder %s11, 4
      %s21 = sphi 0, %s23
      %s24 = sphi 0, %s21
      %s25 = sphi 0, %s24
      %s41 = sphi 0, %s25
      %s45 = sphi 0, %s45
      %s47 = sphi 0, %s45
      %s48 = sphi 0, %s47
      %s62 = sphi 0, %s48
      %s68 = sphi 0, %s70
      %s71 = sphi 0, %s68
      %s72 = sphi 0, %s71
      %s88 = sphi 0, %s72
      %s94 = sphi 0, %s96
      %s97 = sphi 0, %s94
      %s98 = sphi 0, %s97
      %s114 = sphi 0, %s98
      %s120 = sphi 0, %s122
      %s123 = sphi 0, %s120
      %s124 = sphi 0, %s123
      %s140 = sphi 0, %s124
    $region4: #{speech_deconv.2} parent=1 // loop_header_branch
      %14 = sbr.rel (%p12) target = $region8
    $region5: #{speech_deconv.2} parent=1 // loop_body
      %s16 = ssub.s32 %s11, 1
      %s17 = ssub.s32 %s11, 2
      %s18 = sadd.s32 %s11, 1
      %s19 = ssub.s32 %s11, %s18
      %p20 = scmp.eq.s32.totalorder %s19, 0
      %s22 = sadd.s32 %s21, 1
      %s23 = scalar_select %p20, %s21, %s22
      %p26 = pneg %p20
      %p27 = scmp.eq.s32.totalorder %s11, 1
      %p28 = por %p26, %p27
      %p29 = scmp.ne.s32.totalorder %s21, %s24
      %p30 = scmp.eq.s32.totalorder %s11, 0
      %p31 = por %p29, %p30
      %p32 = scmp.ne.s32.totalorder %s21, %s24
      %p33 = scmp.eq.s32.totalorder %s16, 1
      %p34 = por %p32, %p33
      %p35 = scmp.ne.s32.totalorder %s24, %s25
      %p36 = scmp.eq.s32.totalorder %s16, 0
      %p37 = por %p35, %p36
      %p38 = scmp.ne.s32.totalorder %s24, %s25
      %p39 = scmp.eq.s32.totalorder %s17, 1
      %p40 = por %p38, %p39
      %p42 = scmp.ne.s32.totalorder %s25, %s41
      %p43 = scmp.eq.s32.totalorder %s17, 0
      %p44 = por %p42, %p43
      %s46 = sadd.s32 %s45, 1
      %p49 = scmp.eq.s32.totalorder %s11, 1
      %p50 = scmp.ne.s32.totalorder %s45, %s47
      %p51 = scmp.eq.s32.totalorder %s11, 0
      %p52 = por %p50, %p51
      %p53 = scmp.ne.s32.totalorder %s45, %s47
      %p54 = scmp.eq.s32.totalorder %s16, 1
      %p55 = por %p53, %p54
      %p56 = scmp.ne.s32.totalorder %s47, %s48
      %p57 = scmp.eq.s32.totalorder %s16, 0
      %p58 = por %p56, %p57
      %p59 = scmp.ne.s32.totalorder %s47, %s48
      %p60 = scmp.eq.s32.totalorder %s17, 1
      %p61 = por %p59, %p60
      %p63 = scmp.ne.s32.totalorder %s48, %s62
      %p64 = scmp.eq.s32.totalorder %s17, 0
      %p65 = por %p63, %p64
      %s66 = ssub.s32 %s11, %s18
      %p67 = scmp.eq.s32.totalorder %s66, 0
      %s69 = sadd.s32 %s68, 1
      %s70 = scalar_select %p67, %s68, %s69
      %p73 = pneg %p67
      %p74 = scmp.eq.s32.totalorder %s11, 1
      %p75 = por %p73, %p74
      %p76 = scmp.ne.s32.totalorder %s68, %s71
      %p77 = scmp.eq.s32.totalorder %s11, 0
      %p78 = por %p76, %p77
      %p79 = scmp.ne.s32.totalorder %s68, %s71
      %p80 = scmp.eq.s32.totalorder %s16, 1
      %p81 = por %p79, %p80
      %p82 = scmp.ne.s32.totalorder %s71, %s72
      %p83 = scmp.eq.s32.totalorder %s16, 0
      %p84 = por %p82, %p83
      %p85 = scmp.ne.s32.totalorder %s71, %s72
      %p86 = scmp.eq.s32.totalorder %s17, 1
      %p87 = por %p85, %p86
      %p89 = scmp.ne.s32.totalorder %s72, %s88
      %p90 = scmp.eq.s32.totalorder %s17, 0
      %p91 = por %p89, %p90
      %s92 = ssub.s32 %s11, %s18
      %p93 = scmp.eq.s32.totalorder %s92, 0
      %s95 = sadd.s32 %s94, 1
      %s96 = scalar_select %p93, %s94, %s95
      %p99 = pneg %p93
      %p100 = scmp.eq.s32.totalorder %s11, 1
      %p101 = por %p99, %p100
      %p102 = scmp.ne.s32.totalorder %s94, %s97
      %p103 = scmp.eq.s32.totalorder %s11, 0
      %p104 = por %p102, %p103
      %p105 = scmp.ne.s32.totalorder %s94, %s97
      %p106 = scmp.eq.s32.totalorder %s16, 1
      %p107 = por %p105, %p106
      %p108 = scmp.ne.s32.totalorder %s97, %s98
      %p109 = scmp.eq.s32.totalorder %s16, 0
      %p110 = por %p108, %p109
      %p111 = scmp.ne.s32.totalorder %s97, %s98
      %p112 = scmp.eq.s32.totalorder %s17, 1
      %p113 = por %p111, %p112
      %p115 = scmp.ne.s32.totalorder %s98, %s114
      %p116 = scmp.eq.s32.totalorder %s17, 0
      %p117 = por %p115, %p116
      %s118 = ssub.s32 %s11, %s18
      %p119 = scmp.eq.s32.totalorder %s118, 0
      %s121 = sadd.s32 %s120, 1
      %s122 = scalar_select %p119, %s120, %s121
      %p125 = pneg %p119
      %p126 = scmp.eq.s32.totalorder %s11, 1
      %p127 = por %p125, %p126
      %p128 = scmp.ne.s32.totalorder %s120, %s123
      %p129 = scmp.eq.s32.totalorder %s11, 0
      %p130 = por %p128, %p129
      %p131 = scmp.ne.s32.totalorder %s120, %s123
      %p132 = scmp.eq.s32.totalorder %s16, 1
      %p133 = por %p131, %p132
      %p134 = scmp.ne.s32.totalorder %s123, %s124
      %p135 = scmp.eq.s32.totalorder %s16, 0
      %p136 = por %p134, %p135
      %p137 = scmp.ne.s32.totalorder %s123, %s124
      %p138 = scmp.eq.s32.totalorder %s17, 1
      %p139 = por %p137, %p138
      %p141 = scmp.ne.s32.totalorder %s124, %s140
      %p142 = scmp.eq.s32.totalorder %s17, 0
      %p143 = por %p141, %p142
      %p144 = scmp.le.s32.totalorder 1, %s11
      %p145 = scmp.lt.s32.totalorder %s11, 3
      %p146 = pnand %p144, %p145
      %p147 = pneg %p146
      // Predicated region
      $region9: #{speech_deconv.2} parent=5 // pred_check
        _
      $region10: #{speech_deconv.2} parent=5 // pred_check_branch
        %149 = sbr.rel (%p146) target = $region12
      $region11: #{speech_deconv.2} parent=5 // pred_region
        %s150 = ssub.s32 %s11, 1
        // Predicated region
        $region13: #{speech_deconv.2} parent=11 // pred_check
          %p151 = pneg %p58
        $region14: #{speech_deconv.2} parent=11 // pred_check_branch
          %153 = sbr.rel (%p151) target = $region16
        $region15: #{speech_deconv.2} parent=11 // pred_region
          _
        $region16: #{speech_deconv.2} parent=11 // pred_fallthru
          _
      $region12: #{speech_deconv.2} parent=5 // pred_fallthru
        _
      %p154 = scmp.lt.s32.totalorder %s11, 2
      // Predicated region
      $region17: #{speech_deconv.2} parent=5 // pred_check
        %p155 = pneg %p154
      $region18: #{speech_deconv.2} parent=5 // pred_check_branch
        %157 = sbr.rel (%p155) target = $region20
      $region19: #{speech_deconv.2} parent=5 // pred_region
        // Predicated region
        $region21: #{speech_deconv.2} parent=19 // pred_check
          %p158 = pneg %p31
        $region22: #{speech_deconv.2} parent=19 // pred_check_branch
          %160 = sbr.rel (%p158) target = $region24
        $region23: #{speech_deconv.2} parent=19 // pred_region
          %s161 = sand.u32 %s21, 1
          %s162 = sand.u32 %s21, 1
          %s163 = smul.addr %s162, 32
          %s164 = scalar_lea.vmem [#allocation2], %s163
          %s165 = smul.u32 4, %s11
          %s166 = smul.addr %s165, 4
          %s167 = scalar_lea.vmem %s0, %s166
          // Predicated region
          $region25: #{speech_deconv.2} parent=23 // pred_check
            _
          $region26: #{speech_deconv.2} parent=23 // pred_check_branch
            %169 = sbr.rel (0) target = $region28
          $region27: #{speech_deconv.2} parent=23 // pred_region
            // Predicated region
            $region29: #{speech_deconv.2} parent=27 // pred_check
              _
            $region30: #{speech_deconv.2} parent=27 // pred_check_branch
              %171 = sbr.rel (0) target = $region32
            $region31: #{speech_deconv.2} parent=27 // pred_region
              loop: start=0, step=1, limit=1
              $region33: #{speech_deconv.2} parent=31 // loop_pre_header
                _
              $region34: #{speech_deconv.2} parent=31 // loop_header
                %s173 = sphi 0, %s177
                %p174 = scmp.ge.s32.totalorder %s173, 1
                %s178 = sphi %s167, %s167
                %s179 = sphi %s164, %s164
              $region35: #{speech_deconv.2} parent=31 // loop_header_branch
                %176 = sbr.rel (%p174) target = $region39
              $region36: #{speech_deconv.2} parent=31 // loop_body
                %v180 = vld [vmem:[%s178] sm:$0xff]
                %181 = vst [vmem:[%s179] sm:$0xff] %v180
                %v182 = vld [vmem:[%s178 + $0x8] sm:$0xff]
                %183 = vst [vmem:[%s179 + $0x8] sm:$0xff] %v182
                %v184 = vld [vmem:[%s178 + $0x20] sm:$0xff]
                %185 = vst [vmem:[%s179 + $0x10] sm:$0xff] %v184
                %v186 = vld [vmem:[%s178 + $0x28] sm:$0xff]
                %187 = vst [vmem:[%s179 + $0x18] sm:$0xff] %v186
              $region37: #{speech_deconv.2} parent=31 // loop_footer
                %s177 = sadd.s32 1, %s173
              $region38: #{speech_deconv.2} parent=31 // loop_footer_branch
                %172 = sbr.rel target = $region34
              $region39: #{speech_deconv.2} parent=31 // loop_exit
                _
            $region32: #{speech_deconv.2} parent=27 // pred_fallthru
              _
            // Predicated region
            $region40: #{speech_deconv.2} parent=27 // pred_check
              _
            $region41: #{speech_deconv.2} parent=27 // pred_check_branch
              %189 = sbr.rel target = $region43
            $region42: #{speech_deconv.2} parent=27 // pred_region
              _
            $region43: #{speech_deconv.2} parent=27 // pred_fallthru
              _
          $region28: #{speech_deconv.2} parent=23 // pred_fallthru
            _
          %190 = vnop
        $region24: #{speech_deconv.2} parent=19 // pred_fallthru
          _
        // Predicated region
        $region44: #{speech_deconv.2} parent=19 // pred_check
          %p191 = pneg %p78
        $region45: #{speech_deconv.2} parent=19 // pred_check_branch
          %193 = sbr.rel (%p191) target = $region47
        $region46: #{speech_deconv.2} parent=19 // pred_region
          %s194 = smul.u32 4, %s11
          %p195 = scmp.lt.s32.totalorder %s194, 7
          %s196 = scalar_select %p195, %s194, 7
          %s197 = smul.addr %s196, 4
          %s198 = scalar_lea.vmem %s2, %s197
          %s199 = smul.u32 4, %s11
        $region47: #{speech_deconv.2} parent=19 // pred_fallthru
          _
      $region20: #{speech_deconv.2} parent=5 // pred_fallthru
        _
      %p200 = scmp.le.s32.totalorder 1, %s11
      %p201 = scmp.lt.s32.totalorder %s11, 3
      %p202 = pnand %p200, %p201
      %p203 = pneg %p202
      // Predicated region
      $region48: #{speech_deconv.2} parent=5 // pred_check
        _
      $region49: #{speech_deconv.2} parent=5 // pred_check_branch
        %205 = sbr.rel (%p202) target = $region51
      $region50: #{speech_deconv.2} parent=5 // pred_region
        %s206 = ssub.s32 %s11, 1
        %s207 = sand.u32 %s24, 1
        %s208 = sand.u32 %s24, 1
        %s209 = smul.addr %s208, 32
        %s210 = scalar_lea.vmem [#allocation2], %s209
        // Predicated region
        $region52: #{speech_deconv.2} parent=50 // pred_check
          %p211 = pneg %p37
        $region53: #{speech_deconv.2} parent=50 // pred_check_branch
          %213 = sbr.rel (%p211) target = $region55
        $region54: #{speech_deconv.2} parent=50 // pred_region
          _
        $region55: #{speech_deconv.2} parent=50 // pred_fallthru
          _
        %s214 = sand.u32 %s24, 1
        %s215 = sand.u32 %s24, 1
        %s216 = smul.addr %s215, 32
        %s217 = scalar_lea.vmem [#allocation2], %s216
        %p218 = pneg %p37
        %p219 = pneg %p34
        %p220 = pneg %p58
        %p221 = pneg %p55
        %s222 = smul.u32 4, %s16
        %p223 = scmp.lt.s32.totalorder %s222, 7
        %s224 = scalar_select %p223, %s222, 7
        %s225 = smul.addr %s224, 4
        %s226 = scalar_lea.vmem %s2, %s225
        %p227 = pneg %p84
        %p228 = pneg %p81
        %p229 = pneg %p110
        %p230 = pneg %p107
        %p231 = scmp.lt.s32.totalorder %s16, 1
        %s232 = scalar_select %p231, %s16, 1
        %s233 = smul.addr %s232, 8
        %s234 = smul.addr %s233, 8
        %s235 = scalar_lea.vmem %s3, %s234
        %p236 = pneg %p136
        %p237 = pneg %p133
        %p238 = scmp.lt.s32.totalorder %s16, 1
        %s239 = scalar_select %p238, %s16, 1
        %s240 = smul.addr %s239, 8
        %s241 = smul.addr %s240, 8
        %s242 = scalar_lea.vmem %s4, %s241
        %s243 = smul.u32 4, %s16
        %s244 = smul.u32 4, %s16
        %p245 = scmp.lt.s32.totalorder %s244, 7
        %s246 = scalar_select %p245, %s244, 7
        %s247 = smul.addr %s246, 4
        %s248 = scalar_lea.vmem %s2, %s247
        %s249 = smul.u32 4, %s16
        %p250 = scmp.lt.s32.totalorder %s16, 1
        %s251 = scalar_select %p250, %s16, 1
        %s252 = smul.addr %s251, 8
        %s253 = smul.addr %s252, 8
        %s254 = scalar_lea.vmem %s3, %s253
        %p255 = scmp.lt.s32.totalorder %s16, 1
        %s256 = scalar_select %p255, %s16, 1
        %s257 = smul.addr %s256, 8
        %s258 = smul.addr %s257, 8
        %s259 = scalar_lea.vmem %s4, %s258
        %v261 = vld [vmem:[%s1] sm:$0xf]
        %v262 = vld [vmem:[%s1 + $0x4] sm:$0xf]
        %v263 = vld [vmem:[%s1 + $0x8] sm:$0xf]
        %v264 = vld [vmem:[%s1 + $0xc] sm:$0xf]
        %v265 = vld [vmem:[%s1 + $0x10] sm:$0xf]
        %v266 = vld [vmem:[%s1 + $0x14] sm:$0xf]
        %v267 = vld [vmem:[%s1 + $0x18] sm:$0xf]
        %v268 = vld [vmem:[%s1 + $0x1c] sm:$0xf]
        %v269 = vld [vmem:[%s210] sm:$0xff]
        %v270 = vld [vmem:[%s210 + $0x8] sm:$0xff]
        %v271 = vld [vmem:[%s210 + $0x10] sm:$0xff]
        %v272 = vld [vmem:[%s210 + $0x18] sm:$0xff]
        %v281 = vunpack.c.l.b16 %v261
        %v282 = vunpack.c.l.b16 %v262
        %v283 = vunpack.c.l.b16 %v263
        %v284 = vunpack.c.l.b16 %v264
        %v285 = vunpack.c.l.b16 %v265
        %v286 = vunpack.c.l.b16 %v266
        %v287 = vunpack.c.l.b16 %v267
        %v288 = vunpack.c.l.b16 %v268
        %v289 = vpack.c.b16 %v282, %v281
        %v290 = vpack.c.b16 %v284, %v283
        %v291 = vpack.c.b16 %v286, %v285
        %v292 = vpack.c.b16 %v288, %v287
        %v297 = vunpack.c.l.b16 %v269
        %v298 = vunpack.c.h.b16 %v269
        %v299 = vunpack.c.l.b16 %v270
        %v300 = vunpack.c.h.b16 %v270
        %v301 = vunpack.c.l.b16 %v271
        %v302 = vunpack.c.h.b16 %v271
        %v303 = vunpack.c.l.b16 %v272
        %v304 = vunpack.c.h.b16 %v272
        %v305 = vpack.c.b16 %v301, %v297
        %v306 = vpack.c.b16 %v302, %v298
        %v307 = vpack.c.b16 %v303, %v299
        %v308 = vpack.c.b16 %v304, %v300
        %vm313 = vcmask 130048
        %v315 = vsel %vm313, %v289, 0
        %v318 = vsel %vm313, %v290, 0
        %v321 = vsel %vm313, %v291, 0
        %v324 = vsel %vm313, %v292, 0
        %326 = vmatprep.subr.bf16.mxu0 %v306
        %327 = vmatpush1.bf16.msra.mxu0 %v305
        %328 = vmatprep.subr.bf16.mxu0 0
        %329 = vmatpush1.bf16.msra.mxu0 0
        %330 = vmatprep.subr.bf16.mxu0 0
        %331 = vmatpush1.bf16.msra.mxu0 0
        %332 = vmatprep.subr.bf16.mxu0 0
        %333 = vmatpush1.bf16.msra.mxu0 0
        %334 = vmatprep.subr.bf16.mxu0 0
        %335 = vmatpush1.bf16.msra.mxu0 0
        %336 = vmatprep.subr.bf16.mxu0 0
        %337 = vmatpush1.bf16.msra.mxu0 0
        %338 = vmatprep.subr.bf16.mxu0 0
        %339 = vmatpush1.bf16.msra.mxu0 0
        %340 = vmatprep.subr.bf16.mxu0 0
        %341 = vmatpush1.bf16.msra.mxu0 0
        %342 = vmatprep.subr.bf16.mxu0 0
        %343 = vmatpush1.bf16.msra.mxu0 0
        %344 = vmatprep.subr.bf16.mxu0 0
        %345 = vmatpush1.bf16.msra.mxu0 0
        %346 = vmatprep.subr.bf16.mxu0 0
        %347 = vmatpush1.bf16.msra.mxu0 0
        %348 = vmatprep.subr.bf16.mxu0 0
        %349 = vmatpush1.bf16.msra.mxu0 0
        %350 = vmatprep.subr.bf16.mxu0 0
        %351 = vmatpush1.bf16.msra.mxu0 0
        %352 = vmatprep.subr.bf16.mxu0 0
        %353 = vmatpush1.bf16.msra.mxu0 0
        %354 = vmatprep.subr.bf16.mxu0 0
        %355 = vmatpush1.bf16.msra.mxu0 0
        %356 = vmatprep.subr.bf16.mxu0 0
        %357 = vmatpush1.bf16.msra.mxu0 0
        %358 = vmatprep.mubr.bf16.mxu0 0
        %359 = vmatmul.mubr.bf16.gmra.mrb[0].mxu0 %v315
        %v360 = vpop.f32.mrb[0].mxu0
        %v361 = vadd.f32 0.0, %v360
        %v362 = vpop.f32.mrb[0].mxu0
        %v363 = vadd.f32 0.0, %v362
        %v364 = vpop.f32.mrb[0].mxu0
        %v365 = vadd.f32 0.0, %v364
        %v366 = vpop.f32.mrb[0].mxu0
        %v367 = vadd.f32 0.0, %v366
        %368 = vmatprep.mubr.bf16.mxu0 0
        %369 = vmatmul.mubr.bf16.gmra.mrb[0].mxu0 %v318
        %v370 = vpop.f32.mrb[0].mxu0
        %v371 = vadd.f32 0.0, %v370
        %v372 = vpop.f32.mrb[0].mxu0
        %v373 = vadd.f32 0.0, %v372
        %v374 = vpop.f32.mrb[0].mxu0
        %v375 = vadd.f32 0.0, %v374
        %v376 = vpop.f32.mrb[0].mxu0
        %v377 = vadd.f32 0.0, %v376
        %378 = vmatprep.mubr.bf16.mxu0 0
        %379 = vmatmul.mubr.bf16.gmra.mrb[0].mxu0 %v321
        %v380 = vpop.f32.mrb[0].mxu0
        %v381 = vadd.f32 0.0, %v380
        %v382 = vpop.f32.mrb[0].mxu0
        %v383 = vadd.f32 0.0, %v382
        %v384 = vpop.f32.mrb[0].mxu0
        %v385 = vadd.f32 0.0, %v384
        %v386 = vpop.f32.mrb[0].mxu0
        %v387 = vadd.f32 0.0, %v386
        %388 = vmatprep.mubr.bf16.mxu0 0
        %389 = vmatmul.mubr.bf16.gmra.mrb[0].mxu0 %v324
        %v390 = vpop.f32.mrb[0].mxu0
        %v391 = vadd.f32 0.0, %v390
        %v392 = vpop.f32.mrb[0].mxu0
        %v393 = vadd.f32 0.0, %v392
        %v394 = vpop.f32.mrb[0].mxu0
        %v395 = vadd.f32 0.0, %v394
        %v396 = vpop.f32.mrb[0].mxu0
        %v397 = vadd.f32 0.0, %v396
        %398 = vdwg.mxu0
        %399 = vmatprep.subr.bf16.mxu0 %v308
        %400 = vmatpush1.bf16.msra.mxu0 %v307
        %401 = vmatprep.subr.bf16.mxu0 0
        %402 = vmatpush1.bf16.msra.mxu0 0
        %403 = vmatprep.subr.bf16.mxu0 0
        %404 = vmatpush1.bf16.msra.mxu0 0
        %405 = vmatprep.subr.bf16.mxu0 0
        %406 = vmatpush1.bf16.msra.mxu0 0
        %407 = vmatprep.subr.bf16.mxu0 0
        %408 = vmatpush1.bf16.msra.mxu0 0
        %409 = vmatprep.subr.bf16.mxu0 0
        %410 = vmatpush1.bf16.msra.mxu0 0
        %411 = vmatprep.subr.bf16.mxu0 0
        %412 = vmatpush1.bf16.msra.mxu0 0
        %413 = vmatprep.subr.bf16.mxu0 0
        %414 = vmatpush1.bf16.msra.mxu0 0
        %415 = vmatprep.subr.bf16.mxu0 0
        %416 = vmatpush1.bf16.msra.mxu0 0
        %417 = vmatprep.subr.bf16.mxu0 0
        %418 = vmatpush1.bf16.msra.mxu0 0
        %419 = vmatprep.subr.bf16.mxu0 0
        %420 = vmatpush1.bf16.msra.mxu0 0
        %421 = vmatprep.subr.bf16.mxu0 0
        %422 = vmatpush1.bf16.msra.mxu0 0
        %423 = vmatprep.subr.bf16.mxu0 0
        %424 = vmatpush1.bf16.msra.mxu0 0
        %425 = vmatprep.subr.bf16.mxu0 0
        %426 = vmatpush1.bf16.msra.mxu0 0
        %427 = vmatprep.subr.bf16.mxu0 0
        %428 = vmatpush1.bf16.msra.mxu0 0
        %429 = vmatprep.subr.bf16.mxu0 0
        %430 = vmatpush1.bf16.msra.mxu0 0
        %431 = vmatprep.mubr.bf16.mxu0 0
        %432 = vmatmul.mubr.bf16.gmra.mrb[0].mxu0 %v315
        %v433 = vpop.f32.mrb[0].mxu0
        %v434 = vadd.f32 0.0, %v433
        %v435 = vpop.f32.mrb[0].mxu0
        %v436 = vadd.f32 0.0, %v435
        %v437 = vpop.f32.mrb[0].mxu0
        %v438 = vadd.f32 0.0, %v437
        %v439 = vpop.f32.mrb[0].mxu0
        %v440 = vadd.f32 0.0, %v439
        %441 = vmatprep.mubr.bf16.mxu0 0
        %442 = vmatmul.mubr.bf16.gmra.mrb[0].mxu0 %v318
        %v443 = vpop.f32.mrb[0].mxu0
        %v444 = vadd.f32 0.0, %v443
        %v445 = vpop.f32.mrb[0].mxu0
        %v446 = vadd.f32 0.0, %v445
        %v447 = vpop.f32.mrb[0].mxu0
        %v448 = vadd.f32 0.0, %v447
        %v449 = vpop.f32.mrb[0].mxu0
        %v450 = vadd.f32 0.0, %v449
        %451 = vmatprep.mubr.bf16.mxu0 0
        %452 = vmatmul.mubr.bf16.gmra.mrb[0].mxu0 %v321
        %v453 = vpop.f32.mrb[0].mxu0
        %v454 = vadd.f32 0.0, %v453
        %v455 = vpop.f32.mrb[0].mxu0
        %v456 = vadd.f32 0.0, %v455
        %v457 = vpop.f32.mrb[0].mxu0
        %v458 = vadd.f32 0.0, %v457
        %v459 = vpop.f32.mrb[0].mxu0
        %v460 = vadd.f32 0.0, %v459
        %461 = vmatprep.mubr.bf16.mxu0 0
        %462 = vmatmul.mubr.bf16.gmra.mrb[0].mxu0 %v324
        %v463 = vpop.f32.mrb[0].mxu0
        %v464 = vadd.f32 0.0, %v463
        %v465 = vpop.f32.mrb[0].mxu0
        %v466 = vadd.f32 0.0, %v465
        %v467 = vpop.f32.mrb[0].mxu0
        %v468 = vadd.f32 0.0, %v467
        %v469 = vpop.f32.mrb[0].mxu0
        %v470 = vadd.f32 0.0, %v469
        %471 = vdwg.mxu0
        %v472 = vld [vmem:[%s248] sm:$0xff]
        %v473 = vld [vmem:[%s248 + $0x8] sm:$0xff]
        %v476 = vlaneseq
        %v477 = vshrl.u32 %v476, 7
        %v478 = vsub.s32 0, %v477
        %v479 = vrot.slane %v472, %v478
        %v480 = vlaneseq
        %v481 = vshrl.u32 %v480, 7
        %v482 = vsub.s32 4, %v481
        %v483 = vrot.slane %v472, %v482
        %v484 = vlaneseq
        %v485 = vshrl.u32 %v484, 7
        %v486 = vsub.s32 0, %v485
        %v487 = vrot.slane %v473, %v486
        %v488 = vlaneseq
        %v489 = vshrl.u32 %v488, 7
        %v490 = vsub.s32 4, %v489
        %v491 = vrot.slane %v473, %v490
        %v496 = vlaneseq
        %v497 = vshrl.u32 %v496, 7
        %v498 = vsub.s32 0, %v497
        %v499 = vrot.slane %v479, %v498
        %v500 = vlaneseq
        %v501 = vshrl.u32 %v500, 7
        %v502 = vsub.s32 0, %v501
        %v503 = vrot.slane %v483, %v502
        %v504 = vlaneseq
        %v505 = vshrl.u32 %v504, 7
        %v506 = vsub.s32 0, %v505
        %v507 = vrot.slane %v487, %v506
        %v508 = vlaneseq
        %v509 = vshrl.u32 %v508, 7
        %v510 = vsub.s32 0, %v509
        %v511 = vrot.slane %v491, %v510
        %v512 = vlaneseq
        %v513 = vshrl.u32 %v512, 7
        %v514 = vsub.s32 1, %v513
        %v515 = vrot.slane %v472, %v514
        %v516 = vlaneseq
        %v517 = vshrl.u32 %v516, 7
        %v518 = vsub.s32 5, %v517
        %v519 = vrot.slane %v472, %v518
        %v520 = vlaneseq
        %v521 = vshrl.u32 %v520, 7
        %v522 = vsub.s32 1, %v521
        %v523 = vrot.slane %v473, %v522
        %v524 = vlaneseq
        %v525 = vshrl.u32 %v524, 7
        %v526 = vsub.s32 5, %v525
        %v527 = vrot.slane %v473, %v526
        %v532 = vlaneseq
        %v533 = vshrl.u32 %v532, 7
        %v534 = vsub.s32 1, %v533
        %v535 = vrot.slane %v515, %v534
        %v536 = vlaneseq
        %v537 = vshrl.u32 %v536, 7
        %v538 = vsub.s32 1, %v537
        %v539 = vrot.slane %v519, %v538
        %v540 = vlaneseq
        %v541 = vshrl.u32 %v540, 7
        %v542 = vsub.s32 1, %v541
        %v543 = vrot.slane %v523, %v542
        %v544 = vlaneseq
        %v545 = vshrl.u32 %v544, 7
        %v546 = vsub.s32 1, %v545
        %v547 = vrot.slane %v527, %v546
        %v548 = vlaneseq
        %v549 = vshrl.u32 %v548, 7
        %v550 = vsub.s32 2, %v549
        %v551 = vrot.slane %v472, %v550
        %v552 = vlaneseq
        %v553 = vshrl.u32 %v552, 7
        %v554 = vsub.s32 6, %v553
        %v555 = vrot.slane %v472, %v554
        %v556 = vlaneseq
        %v557 = vshrl.u32 %v556, 7
        %v558 = vsub.s32 2, %v557
        %v559 = vrot.slane %v473, %v558
        %v560 = vlaneseq
        %v561 = vshrl.u32 %v560, 7
        %v562 = vsub.s32 6, %v561
        %v563 = vrot.slane %v473, %v562
        %v568 = vlaneseq
        %v569 = vshrl.u32 %v568, 7
        %v570 = vsub.s32 2, %v569
        %v571 = vrot.slane %v551, %v570
        %v572 = vlaneseq
        %v573 = vshrl.u32 %v572, 7
        %v574 = vsub.s32 2, %v573
        %v575 = vrot.slane %v555, %v574
        %v576 = vlaneseq
        %v577 = vshrl.u32 %v576, 7
        %v578 = vsub.s32 2, %v577
        %v579 = vrot.slane %v559, %v578
        %v580 = vlaneseq
        %v581 = vshrl.u32 %v580, 7
        %v582 = vsub.s32 2, %v581
        %v583 = vrot.slane %v563, %v582
        %v584 = vlaneseq
        %v585 = vshrl.u32 %v584, 7
        %v586 = vsub.s32 3, %v585
        %v587 = vrot.slane %v472, %v586
        %v588 = vlaneseq
        %v589 = vshrl.u32 %v588, 7
        %v590 = vsub.s32 7, %v589
        %v591 = vrot.slane %v472, %v590
        %v592 = vlaneseq
        %v593 = vshrl.u32 %v592, 7
        %v594 = vsub.s32 3, %v593
        %v595 = vrot.slane %v473, %v594
        %v596 = vlaneseq
        %v597 = vshrl.u32 %v596, 7
        %v598 = vsub.s32 7, %v597
        %v599 = vrot.slane %v473, %v598
        %v604 = vlaneseq
        %v605 = vshrl.u32 %v604, 7
        %v606 = vsub.s32 3, %v605
        %v607 = vrot.slane %v587, %v606
        %v608 = vlaneseq
        %v609 = vshrl.u32 %v608, 7
        %v610 = vsub.s32 3, %v609
        %v611 = vrot.slane %v591, %v610
        %v612 = vlaneseq
        %v613 = vshrl.u32 %v612, 7
        %v614 = vsub.s32 3, %v613
        %v615 = vrot.slane %v595, %v614
        %v616 = vlaneseq
        %v617 = vshrl.u32 %v616, 7
        %v618 = vsub.s32 3, %v617
        %v619 = vrot.slane %v599, %v618
        %v620 = vadd.f32 %v499, %v503
        %v621 = vadd.f32 %v620, %v507
        %v622 = vadd.f32 %v621, %v511
        %623 = vadd.xlane.f32.xlu0 %v622
        %v624 = vpop.xlane.xlu0 %623
        %v625 = vadd.f32 %v535, %v539
        %v626 = vadd.f32 %v625, %v543
        %v627 = vadd.f32 %v626, %v547
        %628 = vadd.xlane.f32.xlu0 %v627
        %v629 = vpop.xlane.xlu0 %628
        %v630 = vadd.f32 %v571, %v575
        %v631 = vadd.f32 %v630, %v579
        %v632 = vadd.f32 %v631, %v583
        %633 = vadd.xlane.f32.xlu0 %v632
        %v634 = vpop.xlane.xlu0 %633
        %v635 = vadd.f32 %v607, %v611
        %v636 = vadd.f32 %v635, %v615
        %v637 = vadd.f32 %v636, %v619
        %638 = vadd.xlane.f32.xlu0 %v637
        %v639 = vpop.xlane.xlu0 %638
        %v640 = vmul.f32 %v361, %v499
        %v641 = vmul.f32 %v363, %v503
        %v642 = vmul.f32 %v434, %v507
        %v643 = vmul.f32 %v436, %v511
        %v644 = vmul.f32 %v365, %v535
        %v645 = vmul.f32 %v367, %v539
        %v646 = vmul.f32 %v438, %v543
        %v647 = vmul.f32 %v440, %v547
        %v648 = vmul.f32 %v371, %v571
        %v649 = vmul.f32 %v373, %v575
        %v650 = vmul.f32 %v444, %v579
        %v651 = vmul.f32 %v446, %v583
        %v652 = vmul.f32 %v375, %v607
        %v653 = vmul.f32 %v377, %v611
        %v654 = vmul.f32 %v448, %v615
        %v655 = vmul.f32 %v450, %v619
        %v656 = vmul.f32 %v381, %v499
        %v657 = vmul.f32 %v383, %v503
        %v658 = vmul.f32 %v454, %v507
        %v659 = vmul.f32 %v456, %v511
        %v660 = vmul.f32 %v385, %v535
        %v661 = vmul.f32 %v387, %v539
        %v662 = vmul.f32 %v458, %v543
        %v663 = vmul.f32 %v460, %v547
        %v664 = vmul.f32 %v391, %v571
        %v665 = vmul.f32 %v393, %v575
        %v666 = vmul.f32 %v464, %v579
        %v667 = vmul.f32 %v466, %v583
        %v668 = vmul.f32 %v395, %v607
        %v669 = vmul.f32 %v397, %v611
        %v670 = vmul.f32 %v468, %v615
        %v671 = vmul.f32 %v470, %v619
        %v672 = vadd.f32 %v640, %v641
        %v673 = vadd.f32 %v672, %v642
        %v674 = vadd.f32 %v673, %v643
        %675 = vadd.xlane.f32.xlu0 %v674
        %v676 = vpop.xlane.xlu0 %675
        %v677 = vadd.f32 %v644, %v645
        %v678 = vadd.f32 %v677, %v646
        %v679 = vadd.f32 %v678, %v647
        %680 = vadd.xlane.f32.xlu0 %v679
        %v681 = vpop.xlane.xlu0 %680
        %v682 = vadd.f32 %v648, %v649
        %v683 = vadd.f32 %v682, %v650
        %v684 = vadd.f32 %v683, %v651
        %685 = vadd.xlane.f32.xlu0 %v684
        %v686 = vpop.xlane.xlu0 %685
        %v687 = vadd.f32 %v652, %v653
        %v688 = vadd.f32 %v687, %v654
        %v689 = vadd.f32 %v688, %v655
        %690 = vadd.xlane.f32.xlu0 %v689
        %v691 = vpop.xlane.xlu0 %690
        %v692 = vadd.f32 %v656, %v657
        %v693 = vadd.f32 %v692, %v658
        %v694 = vadd.f32 %v693, %v659
        %695 = vadd.xlane.f32.xlu0 %v694
        %v696 = vpop.xlane.xlu0 %695
        %v697 = vadd.f32 %v660, %v661
        %v698 = vadd.f32 %v697, %v662
        %v699 = vadd.f32 %v698, %v663
        %700 = vadd.xlane.f32.xlu0 %v699
        %v701 = vpop.xlane.xlu0 %700
        %v702 = vadd.f32 %v664, %v665
        %v703 = vadd.f32 %v702, %v666
        %v704 = vadd.f32 %v703, %v667
        %705 = vadd.xlane.f32.xlu0 %v704
        %v706 = vpop.xlane.xlu0 %705
        %v707 = vadd.f32 %v668, %v669
        %v708 = vadd.f32 %v707, %v670
        %v709 = vadd.f32 %v708, %v671
        %710 = vadd.xlane.f32.xlu0 %v709
        %v711 = vpop.xlane.xlu0 %710
        %v712 = vmax.f32 %v624, 1.0
        %v713 = vmax.f32 %v629, 1.0
        %v714 = vmax.f32 %v634, 1.0
        %v715 = vmax.f32 %v639, 1.0
        %v716 = vrcp.pop %v712
        %v717 = vmul.f32 %v676, %v716
        %v718 = vrcp.pop %v713
        %v719 = vmul.f32 %v681, %v718
        %v720 = vrcp.pop %v714
        %v721 = vmul.f32 %v686, %v720
        %v722 = vrcp.pop %v715
        %v723 = vmul.f32 %v691, %v722
        %v724 = vmul.f32 %v696, %v716
        %v725 = vmul.f32 %v701, %v718
        %v726 = vmul.f32 %v706, %v720
        %v727 = vmul.f32 %v711, %v722
        %v728 = vsub.f32 %v361, %v717
        %v729 = vsub.f32 %v363, %v717
        %v730 = vsub.f32 %v434, %v717
        %v731 = vsub.f32 %v436, %v717
        %v732 = vsub.f32 %v365, %v719
        %v733 = vsub.f32 %v367, %v719
        %v734 = vsub.f32 %v438, %v719
        %v735 = vsub.f32 %v440, %v719
        %v736 = vsub.f32 %v371, %v721
        %v737 = vsub.f32 %v373, %v721
        %v738 = vsub.f32 %v444, %v721
        %v739 = vsub.f32 %v446, %v721
        %v740 = vsub.f32 %v375, %v723
        %v741 = vsub.f32 %v377, %v723
        %v742 = vsub.f32 %v448, %v723
        %v743 = vsub.f32 %v450, %v723
        %v744 = vsub.f32 %v381, %v724
        %v745 = vsub.f32 %v383, %v724
        %v746 = vsub.f32 %v454, %v724
        %v747 = vsub.f32 %v456, %v724
        %v748 = vsub.f32 %v385, %v725
        %v749 = vsub.f32 %v387, %v725
        %v750 = vsub.f32 %v458, %v725
        %v751 = vsub.f32 %v460, %v725
        %v752 = vsub.f32 %v391, %v726
        %v753 = vsub.f32 %v393, %v726
        %v754 = vsub.f32 %v464, %v726
        %v755 = vsub.f32 %v466, %v726
        %v756 = vsub.f32 %v395, %v727
        %v757 = vsub.f32 %v397, %v727
        %v758 = vsub.f32 %v468, %v727
        %v759 = vsub.f32 %v470, %v727
        %v760 = vmul.f32 %v728, %v499
        %v761 = vmul.f32 %v729, %v503
        %v762 = vmul.f32 %v730, %v507
        %v763 = vmul.f32 %v731, %v511
        %v764 = vmul.f32 %v732, %v535
        %v765 = vmul.f32 %v733, %v539
        %v766 = vmul.f32 %v734, %v543
        %v767 = vmul.f32 %v735, %v547
        %v768 = vmul.f32 %v736, %v571
        %v769 = vmul.f32 %v737, %v575
        %v770 = vmul.f32 %v738, %v579
        %v771 = vmul.f32 %v739, %v583
        %v772 = vmul.f32 %v740, %v607
        %v773 = vmul.f32 %v741, %v611
        %v774 = vmul.f32 %v742, %v615
        %v775 = vmul.f32 %v743, %v619
        %v776 = vmul.f32 %v744, %v499
        %v777 = vmul.f32 %v745, %v503
        %v778 = vmul.f32 %v746, %v507
        %v779 = vmul.f32 %v747, %v511
        %v780 = vmul.f32 %v748, %v535
        %v781 = vmul.f32 %v749, %v539
        %v782 = vmul.f32 %v750, %v543
        %v783 = vmul.f32 %v751, %v547
        %v784 = vmul.f32 %v752, %v571
        %v785 = vmul.f32 %v753, %v575
        %v786 = vmul.f32 %v754, %v579
        %v787 = vmul.f32 %v755, %v583
        %v788 = vmul.f32 %v756, %v607
        %v789 = vmul.f32 %v757, %v611
        %v790 = vmul.f32 %v758, %v615
        %v791 = vmul.f32 %v759, %v619
        %vm792 = vcmask 7168
        %793 = vst.msk [vmem:[%s254] sm:$0xff] %vm792, %v676
        %794 = vst.msk [vmem:[%s254 + $0x8] sm:$0xff] %vm792, %v681
        %795 = vst.msk [vmem:[%s254 + $0x10] sm:$0xff] %vm792, %v686
        %796 = vst.msk [vmem:[%s254 + $0x18] sm:$0xff] %vm792, %v691
        %797 = vst.msk [vmem:[%s254 + $0x20] sm:$0xff] %vm792, %v696
        %798 = vst.msk [vmem:[%s254 + $0x28] sm:$0xff] %vm792, %v701
        %799 = vst.msk [vmem:[%s254 + $0x30] sm:$0xff] %vm792, %v706
        %800 = vst.msk [vmem:[%s254 + $0x38] sm:$0xff] %vm792, %v711
        %v801 = vmul.f32 %v760, %v760
        %v802 = vmul.f32 %v761, %v761
        %v803 = vmul.f32 %v762, %v762
        %v804 = vmul.f32 %v763, %v763
        %v805 = vmul.f32 %v764, %v764
        %v806 = vmul.f32 %v765, %v765
        %v807 = vmul.f32 %v766, %v766
        %v808 = vmul.f32 %v767, %v767
        %v809 = vmul.f32 %v768, %v768
        %v810 = vmul.f32 %v769, %v769
        %v811 = vmul.f32 %v770, %v770
        %v812 = vmul.f32 %v771, %v771
        %v813 = vmul.f32 %v772, %v772
        %v814 = vmul.f32 %v773, %v773
        %v815 = vmul.f32 %v774, %v774
        %v816 = vmul.f32 %v775, %v775
        %v817 = vmul.f32 %v776, %v776
        %v818 = vmul.f32 %v777, %v777
        %v819 = vmul.f32 %v778, %v778
        %v820 = vmul.f32 %v779, %v779
        %v821 = vmul.f32 %v780, %v780
        %v822 = vmul.f32 %v781, %v781
        %v823 = vmul.f32 %v782, %v782
        %v824 = vmul.f32 %v783, %v783
        %v825 = vmul.f32 %v784, %v784
        %v826 = vmul.f32 %v785, %v785
        %v827 = vmul.f32 %v786, %v786
        %v828 = vmul.f32 %v787, %v787
        %v829 = vmul.f32 %v788, %v788
        %v830 = vmul.f32 %v789, %v789
        %v831 = vmul.f32 %v790, %v790
        %v832 = vmul.f32 %v791, %v791
        %v833 = vadd.f32 %v801, %v802
        %v834 = vadd.f32 %v833, %v803
        %v835 = vadd.f32 %v834, %v804
        %836 = vadd.xlane.f32.xlu0 %v835
        %v837 = vpop.xlane.xlu0 %836
        %v838 = vadd.f32 %v805, %v806
        %v839 = vadd.f32 %v838, %v807
        %v840 = vadd.f32 %v839, %v808
        %841 = vadd.xlane.f32.xlu0 %v840
        %v842 = vpop.xlane.xlu0 %841
        %v843 = vadd.f32 %v809, %v810
        %v844 = vadd.f32 %v843, %v811
        %v845 = vadd.f32 %v844, %v812
        %846 = vadd.xlane.f32.xlu0 %v845
        %v847 = vpop.xlane.xlu0 %846
        %v848 = vadd.f32 %v813, %v814
        %v849 = vadd.f32 %v848, %v815
        %v850 = vadd.f32 %v849, %v816
        %851 = vadd.xlane.f32.xlu0 %v850
        %v852 = vpop.xlane.xlu0 %851
        %v853 = vadd.f32 %v817, %v818
        %v854 = vadd.f32 %v853, %v819
        %v855 = vadd.f32 %v854, %v820
        %856 = vadd.xlane.f32.xlu0 %v855
        %v857 = vpop.xlane.xlu0 %856
        %v858 = vadd.f32 %v821, %v822
        %v859 = vadd.f32 %v858, %v823
        %v860 = vadd.f32 %v859, %v824
        %861 = vadd.xlane.f32.xlu0 %v860
        %v862 = vpop.xlane.xlu0 %861
        %v863 = vadd.f32 %v825, %v826
        %v864 = vadd.f32 %v863, %v827
        %v865 = vadd.f32 %v864, %v828
        %866 = vadd.xlane.f32.xlu0 %v865
        %v867 = vpop.xlane.xlu0 %866
        %v868 = vadd.f32 %v829, %v830
        %v869 = vadd.f32 %v868, %v831
        %v870 = vadd.f32 %v869, %v832
        %871 = vadd.xlane.f32.xlu0 %v870
        %v872 = vpop.xlane.xlu0 %871
        %873 = vst.msk [vmem:[%s259] sm:$0xff] %vm792, %v837
        %874 = vst.msk [vmem:[%s259 + $0x8] sm:$0xff] %vm792, %v842
        %875 = vst.msk [vmem:[%s259 + $0x10] sm:$0xff] %vm792, %v847
        %876 = vst.msk [vmem:[%s259 + $0x18] sm:$0xff] %vm792, %v852
        %877 = vst.msk [vmem:[%s259 + $0x20] sm:$0xff] %vm792, %v857
        %878 = vst.msk [vmem:[%s259 + $0x28] sm:$0xff] %vm792, %v862
        %879 = vst.msk [vmem:[%s259 + $0x30] sm:$0xff] %vm792, %v867
        %880 = vst.msk [vmem:[%s259 + $0x38] sm:$0xff] %vm792, %v872
        %p881 = scmp.lt.s32.totalorder %s16, 1
        %s882 = scalar_select %p881, %s16, 1
        %s883 = smul.addr %s882, 8
        %s884 = smul.addr %s883, 8
        %s885 = scalar_lea.vmem %s3, %s884
        %p886 = scmp.lt.s32.totalorder %s16, 1
        %s887 = scalar_select %p886, %s16, 1
        %s888 = smul.addr %s887, 8
        %s889 = smul.addr %s888, 8
        %s890 = scalar_lea.vmem %s4, %s889
        // Predicated region
        $region56: #{speech_deconv.2} parent=50 // pred_check
          %p891 = pneg %p107
        $region57: #{speech_deconv.2} parent=50 // pred_check_branch
          %893 = sbr.rel (%p891) target = $region59
        $region58: #{speech_deconv.2} parent=50 // pred_region
          _
        $region59: #{speech_deconv.2} parent=50 // pred_fallthru
          _
        // Predicated region
        $region60: #{speech_deconv.2} parent=50 // pred_check
          %p894 = pneg %p133
        $region61: #{speech_deconv.2} parent=50 // pred_check_branch
          %896 = sbr.rel (%p894) target = $region63
        $region62: #{speech_deconv.2} parent=50 // pred_region
          _
        $region63: #{speech_deconv.2} parent=50 // pred_fallthru
          _
      $region51: #{speech_deconv.2} parent=5 // pred_fallthru
        _
      %p897 = scmp.le.s32.totalorder 2, %s11
      // Predicated region
      $region64: #{speech_deconv.2} parent=5 // pred_check
        %p898 = pneg %p897
      $region65: #{speech_deconv.2} parent=5 // pred_check_branch
        %900 = sbr.rel (%p898) target = $region67
      $region66: #{speech_deconv.2} parent=5 // pred_region
        %s901 = ssub.s32 %s11, 2
        // Predicated region
        $region68: #{speech_deconv.2} parent=66 // pred_check
          %p902 = pneg %p113
        $region69: #{speech_deconv.2} parent=66 // pred_check_branch
          %904 = sbr.rel (%p902) target = $region71
        $region70: #{speech_deconv.2} parent=66 // pred_region
          %p905 = scmp.lt.s32.totalorder %s17, 1
          %s906 = scalar_select %p905, %s17, 1
          %s907 = smul.addr %s906, 8
          %s908 = smul.addr %s907, 8
          %s909 = scalar_lea.vmem %s3, %s908
        $region71: #{speech_deconv.2} parent=66 // pred_fallthru
          _
        // Predicated region
        $region72: #{speech_deconv.2} parent=66 // pred_check
          %p910 = pneg %p139
        $region73: #{speech_deconv.2} parent=66 // pred_check_branch
          %912 = sbr.rel (%p910) target = $region75
        $region74: #{speech_deconv.2} parent=66 // pred_region
          %p913 = scmp.lt.s32.totalorder %s17, 1
          %s914 = scalar_select %p913, %s17, 1
          %s915 = smul.addr %s914, 8
          %s916 = smul.addr %s915, 8
          %s917 = scalar_lea.vmem %s4, %s916
        $region75: #{speech_deconv.2} parent=66 // pred_fallthru
          _
      $region67: #{speech_deconv.2} parent=5 // pred_fallthru
        _
    $region6: #{speech_deconv.2} parent=1 // loop_footer
      %s15 = sadd.s32 1, %s11
    $region7: #{speech_deconv.2} parent=1 // loop_footer_branch
      %10 = sbr.rel target = $region3
    $region8: #{speech_deconv.2} parent=1 // loop_exit
      _

// kernel: speech_deconv.3
$region0: #{speech_deconv.3}
  #allocation0 [shape = 'u32[]', space=smem, size = 0x4, offset = 0x4, fixed_abs, tag = 'smem constant byte address 0x4 - core index']
  #allocation1 [shape = 'u32[144,128]{1,0:T(1,128)}', space=vmem, size = 0x12000, scoped, tag = 'internal scratch']
  %s0 = inlined_call_operand.vmem [shape: bf16[16,1024], index: 0, kind: input, shape index: {}]
  %s1 = inlined_call_operand.vmem [shape: bf16[64,16], index: 1, kind: input, shape index: {}]
  %s2 = inlined_call_operand.vmem [shape: f32[64,1], index: 2, kind: input, shape index: {}]
  %s3 = inlined_call_operand.vmem [shape: f32[64,1], index: 3, kind: input, shape index: {}]
  %s4 = inlined_call_operand.vmem [shape: f32[32,1024], index: 4, kind: output, shape index: {}]
  %s5 = sld [smem:[#allocation0]]
  $region91: #{speech_deconv.3} parent=0
    _
  %s7 = ssub.s32 1, %s5
  %s8 = scalar_select 0, %s7, %s5
  $region1: #{speech_deconv.3} parent=0
    #allocation2 [shape = 'u8[32768]{0}', space=vmem, size = 0x8000, scoped, tag = 'input window, operand 0']
    #allocation3 [shape = 'u8[131072]{0}', space=vmem, size = 0x20000, scoped, tag = 'output window, operand 0']
    loop: start=0, step=1, limit=4
    $region2: #{speech_deconv.3} parent=1 // loop_pre_header
      _
    $region3: #{speech_deconv.3} parent=1 // loop_header
      %s10 = sphi 0, %s14
      %p11 = scmp.ge.s32.totalorder %s10, 4
      %s20 = sphi 0, %s22
      %s23 = sphi 0, %s20
      %s24 = sphi 0, %s23
      %s40 = sphi 0, %s24
      %s44 = sphi 0, %s44
      %s46 = sphi 0, %s44
      %s47 = sphi 0, %s46
      %s61 = sphi 0, %s47
      %s65 = sphi 0, %s65
      %s67 = sphi 0, %s65
      %s68 = sphi 0, %s67
      %s82 = sphi 0, %s68
      %s86 = sphi 0, %s86
      %s88 = sphi 0, %s86
      %s89 = sphi 0, %s88
      %s103 = sphi 0, %s89
      %s109 = sphi 0, %s111
      %s112 = sphi 0, %s109
      %s113 = sphi 0, %s112
      %s129 = sphi 0, %s113
    $region4: #{speech_deconv.3} parent=1 // loop_header_branch
      %13 = sbr.rel (%p11) target = $region8
    $region5: #{speech_deconv.3} parent=1 // loop_body
      %s15 = ssub.s32 %s10, 1
      %s16 = ssub.s32 %s10, 2
      %s17 = sadd.s32 %s10, 1
      %s18 = ssub.s32 %s10, %s17
      %p19 = scmp.eq.s32.totalorder %s18, 0
      %s21 = sadd.s32 %s20, 1
      %s22 = scalar_select %p19, %s20, %s21
      %p25 = pneg %p19
      %p26 = scmp.eq.s32.totalorder %s10, 1
      %p27 = por %p25, %p26
      %p28 = scmp.ne.s32.totalorder %s20, %s23
      %p29 = scmp.eq.s32.totalorder %s10, 0
      %p30 = por %p28, %p29
      %p31 = scmp.ne.s32.totalorder %s20, %s23
      %p32 = scmp.eq.s32.totalorder %s15, 1
      %p33 = por %p31, %p32
      %p34 = scmp.ne.s32.totalorder %s23, %s24
      %p35 = scmp.eq.s32.totalorder %s15, 0
      %p36 = por %p34, %p35
      %p37 = scmp.ne.s32.totalorder %s23, %s24
      %p38 = scmp.eq.s32.totalorder %s16, 1
      %p39 = por %p37, %p38
      %p41 = scmp.ne.s32.totalorder %s24, %s40
      %p42 = scmp.eq.s32.totalorder %s16, 0
      %p43 = por %p41, %p42
      %s45 = sadd.s32 %s44, 1
      %p48 = scmp.eq.s32.totalorder %s10, 1
      %p49 = scmp.ne.s32.totalorder %s44, %s46
      %p50 = scmp.eq.s32.totalorder %s10, 0
      %p51 = por %p49, %p50
      %p52 = scmp.ne.s32.totalorder %s44, %s46
      %p53 = scmp.eq.s32.totalorder %s15, 1
      %p54 = por %p52, %p53
      %p55 = scmp.ne.s32.totalorder %s46, %s47
      %p56 = scmp.eq.s32.totalorder %s15, 0
      %p57 = por %p55, %p56
      %p58 = scmp.ne.s32.totalorder %s46, %s47
      %p59 = scmp.eq.s32.totalorder %s16, 1
      %p60 = por %p58, %p59
      %p62 = scmp.ne.s32.totalorder %s47, %s61
      %p63 = scmp.eq.s32.totalorder %s16, 0
      %p64 = por %p62, %p63
      %s66 = sadd.s32 %s65, 1
      %p69 = scmp.eq.s32.totalorder %s10, 1
      %p70 = scmp.ne.s32.totalorder %s65, %s67
      %p71 = scmp.eq.s32.totalorder %s10, 0
      %p72 = por %p70, %p71
      %p73 = scmp.ne.s32.totalorder %s65, %s67
      %p74 = scmp.eq.s32.totalorder %s15, 1
      %p75 = por %p73, %p74
      %p76 = scmp.ne.s32.totalorder %s67, %s68
      %p77 = scmp.eq.s32.totalorder %s15, 0
      %p78 = por %p76, %p77
      %p79 = scmp.ne.s32.totalorder %s67, %s68
      %p80 = scmp.eq.s32.totalorder %s16, 1
      %p81 = por %p79, %p80
      %p83 = scmp.ne.s32.totalorder %s68, %s82
      %p84 = scmp.eq.s32.totalorder %s16, 0
      %p85 = por %p83, %p84
      %s87 = sadd.s32 %s86, 1
      %p90 = scmp.eq.s32.totalorder %s10, 1
      %p91 = scmp.ne.s32.totalorder %s86, %s88
      %p92 = scmp.eq.s32.totalorder %s10, 0
      %p93 = por %p91, %p92
      %p94 = scmp.ne.s32.totalorder %s86, %s88
      %p95 = scmp.eq.s32.totalorder %s15, 1
      %p96 = por %p94, %p95
      %p97 = scmp.ne.s32.totalorder %s88, %s89
      %p98 = scmp.eq.s32.totalorder %s15, 0
      %p99 = por %p97, %p98
      %p100 = scmp.ne.s32.totalorder %s88, %s89
      %p101 = scmp.eq.s32.totalorder %s16, 1
      %p102 = por %p100, %p101
      %p104 = scmp.ne.s32.totalorder %s89, %s103
      %p105 = scmp.eq.s32.totalorder %s16, 0
      %p106 = por %p104, %p105
      %s107 = ssub.s32 %s10, %s17
      %p108 = scmp.eq.s32.totalorder %s107, 0
      %s110 = sadd.s32 %s109, 1
      %s111 = scalar_select %p108, %s109, %s110
      %p114 = pneg %p108
      %p115 = scmp.eq.s32.totalorder %s10, 1
      %p116 = por %p114, %p115
      %p117 = scmp.ne.s32.totalorder %s109, %s112
      %p118 = scmp.eq.s32.totalorder %s10, 0
      %p119 = por %p117, %p118
      %p120 = scmp.ne.s32.totalorder %s109, %s112
      %p121 = scmp.eq.s32.totalorder %s15, 1
      %p122 = por %p120, %p121
      %p123 = scmp.ne.s32.totalorder %s112, %s113
      %p124 = scmp.eq.s32.totalorder %s15, 0
      %p125 = por %p123, %p124
      %p126 = scmp.ne.s32.totalorder %s112, %s113
      %p127 = scmp.eq.s32.totalorder %s16, 1
      %p128 = por %p126, %p127
      %p130 = scmp.ne.s32.totalorder %s113, %s129
      %p131 = scmp.eq.s32.totalorder %s16, 0
      %p132 = por %p130, %p131
      %p133 = scmp.le.s32.totalorder 1, %s10
      %p134 = scmp.lt.s32.totalorder %s10, 3
      %p135 = pnand %p133, %p134
      %p136 = pneg %p135
      // Predicated region
      $region9: #{speech_deconv.3} parent=5 // pred_check
        _
      $region10: #{speech_deconv.3} parent=5 // pred_check_branch
        %138 = sbr.rel (%p135) target = $region12
      $region11: #{speech_deconv.3} parent=5 // pred_region
        %s139 = ssub.s32 %s10, 1
        // Predicated region
        $region13: #{speech_deconv.3} parent=11 // pred_check
          %p140 = pneg %p57
        $region14: #{speech_deconv.3} parent=11 // pred_check_branch
          %142 = sbr.rel (%p140) target = $region16
        $region15: #{speech_deconv.3} parent=11 // pred_region
          _
        $region16: #{speech_deconv.3} parent=11 // pred_fallthru
          _
        // Predicated region
        $region17: #{speech_deconv.3} parent=11 // pred_check
          %p143 = pneg %p78
        $region18: #{speech_deconv.3} parent=11 // pred_check_branch
          %145 = sbr.rel (%p143) target = $region20
        $region19: #{speech_deconv.3} parent=11 // pred_region
          _
        $region20: #{speech_deconv.3} parent=11 // pred_fallthru
          _
        // Predicated region
        $region21: #{speech_deconv.3} parent=11 // pred_check
          %p146 = pneg %p99
        $region22: #{speech_deconv.3} parent=11 // pred_check_branch
          %148 = sbr.rel (%p146) target = $region24
        $region23: #{speech_deconv.3} parent=11 // pred_region
          _
        $region24: #{speech_deconv.3} parent=11 // pred_fallthru
          _
      $region12: #{speech_deconv.3} parent=5 // pred_fallthru
        _
      %p149 = scmp.lt.s32.totalorder %s10, 2
      // Predicated region
      $region25: #{speech_deconv.3} parent=5 // pred_check
        %p150 = pneg %p149
      $region26: #{speech_deconv.3} parent=5 // pred_check_branch
        %152 = sbr.rel (%p150) target = $region28
      $region27: #{speech_deconv.3} parent=5 // pred_region
        // Predicated region
        $region29: #{speech_deconv.3} parent=27 // pred_check
          %p153 = pneg %p30
        $region30: #{speech_deconv.3} parent=27 // pred_check_branch
          %155 = sbr.rel (%p153) target = $region32
        $region31: #{speech_deconv.3} parent=27 // pred_region
          %s156 = sand.u32 %s20, 1
          %s157 = sand.u32 %s20, 1
          %s158 = smul.addr %s157, 32
          %s159 = scalar_lea.vmem [#allocation2], %s158
          %s160 = smul.u32 4, %s10
          %s161 = smul.addr %s160, 4
          %s162 = scalar_lea.vmem %s0, %s161
          // Predicated region
          $region33: #{speech_deconv.3} parent=31 // pred_check
            _
          $region34: #{speech_deconv.3} parent=31 // pred_check_branch
            %164 = sbr.rel (0) target = $region36
          $region35: #{speech_deconv.3} parent=31 // pred_region
            // Predicated region
            $region37: #{speech_deconv.3} parent=35 // pred_check
              _
            $region38: #{speech_deconv.3} parent=35 // pred_check_branch
              %166 = sbr.rel (0) target = $region40
            $region39: #{speech_deconv.3} parent=35 // pred_region
              loop: start=0, step=1, limit=1
              $region41: #{speech_deconv.3} parent=39 // loop_pre_header
                _
              $region42: #{speech_deconv.3} parent=39 // loop_header
                %s168 = sphi 0, %s172
                %p169 = scmp.ge.s32.totalorder %s168, 1
                %s173 = sphi %s162, %s162
                %s174 = sphi %s159, %s159
              $region43: #{speech_deconv.3} parent=39 // loop_header_branch
                %171 = sbr.rel (%p169) target = $region47
              $region44: #{speech_deconv.3} parent=39 // loop_body
                %v175 = vld [vmem:[%s173] sm:$0xff]
                %176 = vst [vmem:[%s174] sm:$0xff] %v175
                %v177 = vld [vmem:[%s173 + $0x8] sm:$0xff]
                %178 = vst [vmem:[%s174 + $0x8] sm:$0xff] %v177
                %v179 = vld [vmem:[%s173 + $0x20] sm:$0xff]
                %180 = vst [vmem:[%s174 + $0x10] sm:$0xff] %v179
                %v181 = vld [vmem:[%s173 + $0x28] sm:$0xff]
                %182 = vst [vmem:[%s174 + $0x18] sm:$0xff] %v181
              $region45: #{speech_deconv.3} parent=39 // loop_footer
                %s172 = sadd.s32 1, %s168
              $region46: #{speech_deconv.3} parent=39 // loop_footer_branch
                %167 = sbr.rel target = $region42
              $region47: #{speech_deconv.3} parent=39 // loop_exit
                _
            $region40: #{speech_deconv.3} parent=35 // pred_fallthru
              _
            // Predicated region
            $region48: #{speech_deconv.3} parent=35 // pred_check
              _
            $region49: #{speech_deconv.3} parent=35 // pred_check_branch
              %184 = sbr.rel target = $region51
            $region50: #{speech_deconv.3} parent=35 // pred_region
              _
            $region51: #{speech_deconv.3} parent=35 // pred_fallthru
              _
          $region36: #{speech_deconv.3} parent=31 // pred_fallthru
            _
          %185 = vnop
        $region32: #{speech_deconv.3} parent=27 // pred_fallthru
          _
      $region28: #{speech_deconv.3} parent=5 // pred_fallthru
        _
      %p186 = scmp.le.s32.totalorder 1, %s10
      %p187 = scmp.lt.s32.totalorder %s10, 3
      %p188 = pnand %p186, %p187
      %p189 = pneg %p188
      // Predicated region
      $region52: #{speech_deconv.3} parent=5 // pred_check
        _
      $region53: #{speech_deconv.3} parent=5 // pred_check_branch
        %191 = sbr.rel (%p188) target = $region55
      $region54: #{speech_deconv.3} parent=5 // pred_region
        %s192 = ssub.s32 %s10, 1
        %s193 = sand.u32 %s23, 1
        %s194 = sand.u32 %s23, 1
        %s195 = smul.addr %s194, 32
        %s196 = scalar_lea.vmem [#allocation2], %s195
        // Predicated region
        $region56: #{speech_deconv.3} parent=54 // pred_check
          %p197 = pneg %p36
        $region57: #{speech_deconv.3} parent=54 // pred_check_branch
          %199 = sbr.rel (%p197) target = $region59
        $region58: #{speech_deconv.3} parent=54 // pred_region
          _
        $region59: #{speech_deconv.3} parent=54 // pred_fallthru
          _
        %s200 = sand.u32 %s23, 1
        %s201 = sand.u32 %s23, 1
        %s202 = smul.addr %s201, 32
        %s203 = scalar_lea.vmem [#allocation2], %s202
        %p204 = pneg %p36
        %p205 = pneg %p33
        %p206 = pneg %p57
        %p207 = pneg %p54
        %p208 = pneg %p78
        %p209 = pneg %p75
        %p210 = pneg %p99
        %p211 = pneg %p96
        %p212 = pneg %p125
        %p213 = pneg %p122
        %s214 = sand.u32 %s112, 1
        %s215 = sand.u32 %s112, 1
        %s216 = smul.addr %s215, 128
        %s217 = scalar_lea.vmem [#allocation3], %s216
        %s218 = smul.u32 4, %s15
        %s219 = smul.u32 4, %s15
        %v221 = vld [vmem:[%s1] sm:$0xf]
        %v222 = vld [vmem:[%s1 + $0x4] sm:$0xf]
        %v223 = vld [vmem:[%s1 + $0x8] sm:$0xf]
        %v224 = vld [vmem:[%s1 + $0xc] sm:$0xf]
        %v225 = vld [vmem:[%s1 + $0x10] sm:$0xf]
        %v226 = vld [vmem:[%s1 + $0x14] sm:$0xf]
        %v227 = vld [vmem:[%s1 + $0x18] sm:$0xf]
        %v228 = vld [vmem:[%s1 + $0x1c] sm:$0xf]
        %v229 = vld [vmem:[%s196] sm:$0xff]
        %v230 = vld [vmem:[%s196 + $0x8] sm:$0xff]
        %v231 = vld [vmem:[%s196 + $0x10] sm:$0xff]
        %v232 = vld [vmem:[%s196 + $0x18] sm:$0xff]
        %v241 = vunpack.c.l.b16 %v221
        %v242 = vunpack.c.l.b16 %v222
        %v243 = vunpack.c.l.b16 %v223
        %v244 = vunpack.c.l.b16 %v224
        %v245 = vunpack.c.l.b16 %v225
        %v246 = vunpack.c.l.b16 %v226
        %v247 = vunpack.c.l.b16 %v227
        %v248 = vunpack.c.l.b16 %v228
        %v249 = vpack.c.b16 %v242, %v241
        %v250 = vpack.c.b16 %v244, %v243
        %v251 = vpack.c.b16 %v246, %v245
        %v252 = vpack.c.b16 %v248, %v247
        %v257 = vunpack.c.l.b16 %v229
        %v258 = vunpack.c.h.b16 %v229
        %v259 = vunpack.c.l.b16 %v230
        %v260 = vunpack.c.h.b16 %v230
        %v261 = vunpack.c.l.b16 %v231
        %v262 = vunpack.c.h.b16 %v231
        %v263 = vunpack.c.l.b16 %v232
        %v264 = vunpack.c.h.b16 %v232
        %v265 = vpack.c.b16 %v261, %v257
        %v266 = vpack.c.b16 %v262, %v258
        %v267 = vpack.c.b16 %v263, %v259
        %v268 = vpack.c.b16 %v264, %v260
        %vm273 = vcmask 130048
        %v275 = vsel %vm273, %v249, 0
        %v278 = vsel %vm273, %v250, 0
        %v281 = vsel %vm273, %v251, 0
        %v284 = vsel %vm273, %v252, 0
        %286 = vmatprep.subr.bf16.mxu0 %v266
        %287 = vmatpush1.bf16.msra.mxu0 %v265
        %288 = vmatprep.subr.bf16.mxu0 0
        %289 = vmatpush1.bf16.msra.mxu0 0
        %290 = vmatprep.subr.bf16.mxu0 0
        %291 = vmatpush1.bf16.msra.mxu0 0
        %292 = vmatprep.subr.bf16.mxu0 0
        %293 = vmatpush1.bf16.msra.mxu0 0
        %294 = vmatprep.subr.bf16.mxu0 0
        %295 = vmatpush1.bf16.msra.mxu0 0
        %296 = vmatprep.subr.bf16.mxu0 0
        %297 = vmatpush1.bf16.msra.mxu0 0
        %298 = vmatprep.subr.bf16.mxu0 0
        %299 = vmatpush1.bf16.msra.mxu0 0
        %300 = vmatprep.subr.bf16.mxu0 0
        %301 = vmatpush1.bf16.msra.mxu0 0
        %302 = vmatprep.subr.bf16.mxu0 0
        %303 = vmatpush1.bf16.msra.mxu0 0
        %304 = vmatprep.subr.bf16.mxu0 0
        %305 = vmatpush1.bf16.msra.mxu0 0
        %306 = vmatprep.subr.bf16.mxu0 0
        %307 = vmatpush1.bf16.msra.mxu0 0
        %308 = vmatprep.subr.bf16.mxu0 0
        %309 = vmatpush1.bf16.msra.mxu0 0
        %310 = vmatprep.subr.bf16.mxu0 0
        %311 = vmatpush1.bf16.msra.mxu0 0
        %312 = vmatprep.subr.bf16.mxu0 0
        %313 = vmatpush1.bf16.msra.mxu0 0
        %314 = vmatprep.subr.bf16.mxu0 0
        %315 = vmatpush1.bf16.msra.mxu0 0
        %316 = vmatprep.subr.bf16.mxu0 0
        %317 = vmatpush1.bf16.msra.mxu0 0
        %318 = vmatprep.mubr.bf16.mxu0 0
        %319 = vmatmul.mubr.bf16.gmra.mrb[0].mxu0 %v275
        %v320 = vpop.f32.mrb[0].mxu0
        %v321 = vadd.f32 0.0, %v320
        %v322 = vpop.f32.mrb[0].mxu0
        %v323 = vadd.f32 0.0, %v322
        %v324 = vpop.f32.mrb[0].mxu0
        %v325 = vadd.f32 0.0, %v324
        %v326 = vpop.f32.mrb[0].mxu0
        %v327 = vadd.f32 0.0, %v326
        %328 = vmatprep.mubr.bf16.mxu0 0
        %329 = vmatmul.mubr.bf16.gmra.mrb[0].mxu0 %v278
        %v330 = vpop.f32.mrb[0].mxu0
        %v331 = vadd.f32 0.0, %v330
        %v332 = vpop.f32.mrb[0].mxu0
        %v333 = vadd.f32 0.0, %v332
        %v334 = vpop.f32.mrb[0].mxu0
        %v335 = vadd.f32 0.0, %v334
        %v336 = vpop.f32.mrb[0].mxu0
        %v337 = vadd.f32 0.0, %v336
        %338 = vmatprep.mubr.bf16.mxu0 0
        %339 = vmatmul.mubr.bf16.gmra.mrb[0].mxu0 %v281
        %v340 = vpop.f32.mrb[0].mxu0
        %v341 = vadd.f32 0.0, %v340
        %v342 = vpop.f32.mrb[0].mxu0
        %v343 = vadd.f32 0.0, %v342
        %v344 = vpop.f32.mrb[0].mxu0
        %v345 = vadd.f32 0.0, %v344
        %v346 = vpop.f32.mrb[0].mxu0
        %v347 = vadd.f32 0.0, %v346
        %348 = vmatprep.mubr.bf16.mxu0 0
        %349 = vmatmul.mubr.bf16.gmra.mrb[0].mxu0 %v284
        %v350 = vpop.f32.mrb[0].mxu0
        %v351 = vadd.f32 0.0, %v350
        %v352 = vpop.f32.mrb[0].mxu0
        %v353 = vadd.f32 0.0, %v352
        %v354 = vpop.f32.mrb[0].mxu0
        %v355 = vadd.f32 0.0, %v354
        %v356 = vpop.f32.mrb[0].mxu0
        %v357 = vadd.f32 0.0, %v356
        %358 = vdwg.mxu0
        %359 = vmatprep.subr.bf16.mxu0 %v268
        %360 = vmatpush1.bf16.msra.mxu0 %v267
        %361 = vmatprep.subr.bf16.mxu0 0
        %362 = vmatpush1.bf16.msra.mxu0 0
        %363 = vmatprep.subr.bf16.mxu0 0
        %364 = vmatpush1.bf16.msra.mxu0 0
        %365 = vmatprep.subr.bf16.mxu0 0
        %366 = vmatpush1.bf16.msra.mxu0 0
        %367 = vmatprep.subr.bf16.mxu0 0
        %368 = vmatpush1.bf16.msra.mxu0 0
        %369 = vmatprep.subr.bf16.mxu0 0
        %370 = vmatpush1.bf16.msra.mxu0 0
        %371 = vmatprep.subr.bf16.mxu0 0
        %372 = vmatpush1.bf16.msra.mxu0 0
        %373 = vmatprep.subr.bf16.mxu0 0
        %374 = vmatpush1.bf16.msra.mxu0 0
        %375 = vmatprep.subr.bf16.mxu0 0
        %376 = vmatpush1.bf16.msra.mxu0 0
        %377 = vmatprep.subr.bf16.mxu0 0
        %378 = vmatpush1.bf16.msra.mxu0 0
        %379 = vmatprep.subr.bf16.mxu0 0
        %380 = vmatpush1.bf16.msra.mxu0 0
        %381 = vmatprep.subr.bf16.mxu0 0
        %382 = vmatpush1.bf16.msra.mxu0 0
        %383 = vmatprep.subr.bf16.mxu0 0
        %384 = vmatpush1.bf16.msra.mxu0 0
        %385 = vmatprep.subr.bf16.mxu0 0
        %386 = vmatpush1.bf16.msra.mxu0 0
        %387 = vmatprep.subr.bf16.mxu0 0
        %388 = vmatpush1.bf16.msra.mxu0 0
        %389 = vmatprep.subr.bf16.mxu0 0
        %390 = vmatpush1.bf16.msra.mxu0 0
        %391 = vmatprep.mubr.bf16.mxu0 0
        %392 = vmatmul.mubr.bf16.gmra.mrb[0].mxu0 %v275
        %v393 = vpop.f32.mrb[0].mxu0
        %v394 = vadd.f32 0.0, %v393
        %v395 = vpop.f32.mrb[0].mxu0
        %v396 = vadd.f32 0.0, %v395
        %v397 = vpop.f32.mrb[0].mxu0
        %v398 = vadd.f32 0.0, %v397
        %v399 = vpop.f32.mrb[0].mxu0
        %v400 = vadd.f32 0.0, %v399
        %401 = vmatprep.mubr.bf16.mxu0 0
        %402 = vmatmul.mubr.bf16.gmra.mrb[0].mxu0 %v278
        %v403 = vpop.f32.mrb[0].mxu0
        %v404 = vadd.f32 0.0, %v403
        %v405 = vpop.f32.mrb[0].mxu0
        %v406 = vadd.f32 0.0, %v405
        %v407 = vpop.f32.mrb[0].mxu0
        %v408 = vadd.f32 0.0, %v407
        %v409 = vpop.f32.mrb[0].mxu0
        %v410 = vadd.f32 0.0, %v409
        %411 = vmatprep.mubr.bf16.mxu0 0
        %412 = vmatmul.mubr.bf16.gmra.mrb[0].mxu0 %v281
        %v413 = vpop.f32.mrb[0].mxu0
        %v414 = vadd.f32 0.0, %v413
        %v415 = vpop.f32.mrb[0].mxu0
        %v416 = vadd.f32 0.0, %v415
        %v417 = vpop.f32.mrb[0].mxu0
        %v418 = vadd.f32 0.0, %v417
        %v419 = vpop.f32.mrb[0].mxu0
        %v420 = vadd.f32 0.0, %v419
        %421 = vmatprep.mubr.bf16.mxu0 0
        %422 = vmatmul.mubr.bf16.gmra.mrb[0].mxu0 %v284
        %v423 = vpop.f32.mrb[0].mxu0
        %v424 = vadd.f32 0.0, %v423
        %v425 = vpop.f32.mrb[0].mxu0
        %v426 = vadd.f32 0.0, %v425
        %v427 = vpop.f32.mrb[0].mxu0
        %v428 = vadd.f32 0.0, %v427
        %v429 = vpop.f32.mrb[0].mxu0
        %v430 = vadd.f32 0.0, %v429
        %431 = vdwg.mxu0
        %v432 = vld [vmem:[%s2] sm:$0xff]
        %v433 = vld [vmem:[%s2 + $0x8] sm:$0xff]
        %v434 = vld [vmem:[%s2 + $0x10] sm:$0xff]
        %v435 = vld [vmem:[%s2 + $0x18] sm:$0xff]
        %v436 = vld [vmem:[%s2 + $0x20] sm:$0xff]
        %v437 = vld [vmem:[%s2 + $0x28] sm:$0xff]
        %v438 = vld [vmem:[%s2 + $0x30] sm:$0xff]
        %v439 = vld [vmem:[%s2 + $0x38] sm:$0xff]
        %441 = vset.pattern.permute.xlu0 0
        %442 = vperm.xlu0 %441, %v432
        %v443 = vpop.permute.xlu0 %442
        %446 = vset.pattern.permute.xlu0 0
        %447 = vperm.xlu0 %446, %v433
        %v448 = vpop.permute.xlu0 %447
        %451 = vset.pattern.permute.xlu0 0
        %452 = vperm.xlu0 %451, %v434
        %v453 = vpop.permute.xlu0 %452
        %456 = vset.pattern.permute.xlu0 0
        %457 = vperm.xlu0 %456, %v435
        %v458 = vpop.permute.xlu0 %457
        %461 = vset.pattern.permute.xlu0 0
        %462 = vperm.xlu0 %461, %v436
        %v463 = vpop.permute.xlu0 %462
        %466 = vset.pattern.permute.xlu0 0
        %467 = vperm.xlu0 %466, %v437
        %v468 = vpop.permute.xlu0 %467
        %471 = vset.pattern.permute.xlu0 0
        %472 = vperm.xlu0 %471, %v438
        %v473 = vpop.permute.xlu0 %472
        %476 = vset.pattern.permute.xlu0 0
        %477 = vperm.xlu0 %476, %v439
        %v478 = vpop.permute.xlu0 %477
        %v480 = vmul.f32 %v321, %v443
        %v481 = vmul.f32 %v323, %v443
        %v482 = vmul.f32 %v394, %v443
        %v483 = vmul.f32 %v396, %v443
        %v484 = vmul.f32 %v325, %v448
        %v485 = vmul.f32 %v327, %v448
        %v486 = vmul.f32 %v398, %v448
        %v487 = vmul.f32 %v400, %v448
        %v488 = vmul.f32 %v331, %v453
        %v489 = vmul.f32 %v333, %v453
        %v490 = vmul.f32 %v404, %v453
        %v491 = vmul.f32 %v406, %v453
        %v492 = vmul.f32 %v335, %v458
        %v493 = vmul.f32 %v337, %v458
        %v494 = vmul.f32 %v408, %v458
        %v495 = vmul.f32 %v410, %v458
        %v496 = vmul.f32 %v341, %v463
        %v497 = vmul.f32 %v343, %v463
        %v498 = vmul.f32 %v414, %v463
        %v499 = vmul.f32 %v416, %v463
        %v500 = vmul.f32 %v345, %v468
        %v501 = vmul.f32 %v347, %v468
        %v502 = vmul.f32 %v418, %v468
        %v503 = vmul.f32 %v420, %v468
        %v504 = vmul.f32 %v351, %v473
        %v505 = vmul.f32 %v353, %v473
        %v506 = vmul.f32 %v424, %v473
        %v507 = vmul.f32 %v426, %v473
        %v508 = vmul.f32 %v355, %v478
        %v509 = vmul.f32 %v357, %v478
        %v510 = vmul.f32 %v428, %v478
        %v511 = vmul.f32 %v430, %v478
        %v512 = vld [vmem:[%s3] sm:$0xff]
        %v513 = vld [vmem:[%s3 + $0x8] sm:$0xff]
        %v514 = vld [vmem:[%s3 + $0x10] sm:$0xff]
        %v515 = vld [vmem:[%s3 + $0x18] sm:$0xff]
        %v516 = vld [vmem:[%s3 + $0x20] sm:$0xff]
        %v517 = vld [vmem:[%s3 + $0x28] sm:$0xff]
        %v518 = vld [vmem:[%s3 + $0x30] sm:$0xff]
        %v519 = vld [vmem:[%s3 + $0x38] sm:$0xff]
        %521 = vset.pattern.permute.xlu0 0
        %522 = vperm.xlu0 %521, %v512
        %v523 = vpop.permute.xlu0 %522
        %526 = vset.pattern.permute.xlu0 0
        %527 = vperm.xlu0 %526, %v513
        %v528 = vpop.permute.xlu0 %527
        %531 = vset.pattern.permute.xlu0 0
        %532 = vperm.xlu0 %531, %v514
        %v533 = vpop.permute.xlu0 %532
        %536 = vset.pattern.permute.xlu0 0
        %537 = vperm.xlu0 %536, %v515
        %v538 = vpop.permute.xlu0 %537
        %541 = vset.pattern.permute.xlu0 0
        %542 = vperm.xlu0 %541, %v516
        %v543 = vpop.permute.xlu0 %542
        %546 = vset.pattern.permute.xlu0 0
        %547 = vperm.xlu0 %546, %v517
        %v548 = vpop.permute.xlu0 %547
        %551 = vset.pattern.permute.xlu0 0
        %552 = vperm.xlu0 %551, %v518
        %v553 = vpop.permute.xlu0 %552
        %556 = vset.pattern.permute.xlu0 0
        %557 = vperm.xlu0 %556, %v519
        %v558 = vpop.permute.xlu0 %557
        %v560 = vadd.f32 %v480, %v523
        %v561 = vadd.f32 %v481, %v523
        %v562 = vadd.f32 %v482, %v523
        %v563 = vadd.f32 %v483, %v523
        %v564 = vadd.f32 %v484, %v528
        %v565 = vadd.f32 %v485, %v528
        %v566 = vadd.f32 %v486, %v528
        %v567 = vadd.f32 %v487, %v528
        %v568 = vadd.f32 %v488, %v533
        %v569 = vadd.f32 %v489, %v533
        %v570 = vadd.f32 %v490, %v533
        %v571 = vadd.f32 %v491, %v533
        %v572 = vadd.f32 %v492, %v538
        %v573 = vadd.f32 %v493, %v538
        %v574 = vadd.f32 %v494, %v538
        %v575 = vadd.f32 %v495, %v538
        %v576 = vadd.f32 %v496, %v543
        %v577 = vadd.f32 %v497, %v543
        %v578 = vadd.f32 %v498, %v543
        %v579 = vadd.f32 %v499, %v543
        %v580 = vadd.f32 %v500, %v548
        %v581 = vadd.f32 %v501, %v548
        %v582 = vadd.f32 %v502, %v548
        %v583 = vadd.f32 %v503, %v548
        %v584 = vadd.f32 %v504, %v553
        %v585 = vadd.f32 %v505, %v553
        %v586 = vadd.f32 %v506, %v553
        %v587 = vadd.f32 %v507, %v553
        %v588 = vadd.f32 %v508, %v558
        %v589 = vadd.f32 %v509, %v558
        %v590 = vadd.f32 %v510, %v558
        %v591 = vadd.f32 %v511, %v558
        %v592 = vxor.u32 %v576, 2147483648
        %v593 = vxor.u32 %v577, 2147483648
        %v594 = vxor.u32 %v578, 2147483648
        %v595 = vxor.u32 %v579, 2147483648
        %v596 = vxor.u32 %v580, 2147483648
        %v597 = vxor.u32 %v581, 2147483648
        %v598 = vxor.u32 %v582, 2147483648
        %v599 = vxor.u32 %v583, 2147483648
        %v600 = vxor.u32 %v584, 2147483648
        %v601 = vxor.u32 %v585, 2147483648
        %v602 = vxor.u32 %v586, 2147483648
        %v603 = vxor.u32 %v587, 2147483648
        %v604 = vxor.u32 %v588, 2147483648
        %v605 = vxor.u32 %v589, 2147483648
        %v606 = vxor.u32 %v590, 2147483648
        %v607 = vxor.u32 %v591, 2147483648
        %v608 = vmul.f32 %v592, 1.442695
        %v609 = vpow.pop %v608
        %v610 = vmul.f32 %v593, 1.442695
        %v611 = vpow.pop %v610
        %v612 = vmul.f32 %v594, 1.442695
        %v613 = vpow.pop %v612
        %v614 = vmul.f32 %v595, 1.442695
        %v615 = vpow.pop %v614
        %v616 = vmul.f32 %v596, 1.442695
        %v617 = vpow.pop %v616
        %v618 = vmul.f32 %v597, 1.442695
        %v619 = vpow.pop %v618
        %v620 = vmul.f32 %v598, 1.442695
        %v621 = vpow.pop %v620
        %v622 = vmul.f32 %v599, 1.442695
        %v623 = vpow.pop %v622
        %v624 = vmul.f32 %v600, 1.442695
        %v625 = vpow.pop %v624
        %v626 = vmul.f32 %v601, 1.442695
        %v627 = vpow.pop %v626
        %v628 = vmul.f32 %v602, 1.442695
        %v629 = vpow.pop %v628
        %v630 = vmul.f32 %v603, 1.442695
        %v631 = vpow.pop %v630
        %v632 = vmul.f32 %v604, 1.442695
        %v633 = vpow.pop %v632
        %v634 = vmul.f32 %v605, 1.442695
        %v635 = vpow.pop %v634
        %v636 = vmul.f32 %v606, 1.442695
        %v637 = vpow.pop %v636
        %v638 = vmul.f32 %v607, 1.442695
        %v639 = vpow.pop %v638
        %v640 = vadd.f32 %v609, 1.0
        %v641 = vadd.f32 %v611, 1.0
        %v642 = vadd.f32 %v613, 1.0
        %v643 = vadd.f32 %v615, 1.0
        %v644 = vadd.f32 %v617, 1.0
        %v645 = vadd.f32 %v619, 1.0
        %v646 = vadd.f32 %v621, 1.0
        %v647 = vadd.f32 %v623, 1.0
        %v648 = vadd.f32 %v625, 1.0
        %v649 = vadd.f32 %v627, 1.0
        %v650 = vadd.f32 %v629, 1.0
        %v651 = vadd.f32 %v631, 1.0
        %v652 = vadd.f32 %v633, 1.0
        %v653 = vadd.f32 %v635, 1.0
        %v654 = vadd.f32 %v637, 1.0
        %v655 = vadd.f32 %v639, 1.0
        %v656 = vrcp.pop %v640
        %v657 = vmul.f32 1.0, %v656
        %v658 = vrcp.pop %v641
        %v659 = vmul.f32 1.0, %v658
        %v660 = vrcp.pop %v642
        %v661 = vmul.f32 1.0, %v660
        %v662 = vrcp.pop %v643
        %v663 = vmul.f32 1.0, %v662
        %v664 = vrcp.pop %v644
        %v665 = vmul.f32 1.0, %v664
        %v666 = vrcp.pop %v645
        %v667 = vmul.f32 1.0, %v666
        %v668 = vrcp.pop %v646
        %v669 = vmul.f32 1.0, %v668
        %v670 = vrcp.pop %v647
        %v671 = vmul.f32 1.0, %v670
        %v672 = vrcp.pop %v648
        %v673 = vmul.f32 1.0, %v672
        %v674 = vrcp.pop %v649
        %v675 = vmul.f32 1.0, %v674
        %v676 = vrcp.pop %v650
        %v677 = vmul.f32 1.0, %v676
        %v678 = vrcp.pop %v651
        %v679 = vmul.f32 1.0, %v678
        %v680 = vrcp.pop %v652
        %v681 = vmul.f32 1.0, %v680
        %v682 = vrcp.pop %v653
        %v683 = vmul.f32 1.0, %v682
        %v684 = vrcp.pop %v654
        %v685 = vmul.f32 1.0, %v684
        %v686 = vrcp.pop %v655
        %v687 = vmul.f32 1.0, %v686
        %v688 = vmul.f32 %v560, %v657
        %v689 = vmul.f32 %v561, %v659
        %v690 = vmul.f32 %v562, %v661
        %v691 = vmul.f32 %v563, %v663
        %v692 = vmul.f32 %v564, %v665
        %v693 = vmul.f32 %v565, %v667
        %v694 = vmul.f32 %v566, %v669
        %v695 = vmul.f32 %v567, %v671
        %v696 = vmul.f32 %v568, %v673
        %v697 = vmul.f32 %v569, %v675
        %v698 = vmul.f32 %v570, %v677
        %v699 = vmul.f32 %v571, %v679
        %v700 = vmul.f32 %v572, %v681
        %v701 = vmul.f32 %v573, %v683
        %v702 = vmul.f32 %v574, %v685
        %v703 = vmul.f32 %v575, %v687
        %704 = vst [vmem:[%s217] sm:$0xff] %v688
        %705 = vst [vmem:[%s217 + $0x8] sm:$0xff] %v689
        %706 = vst [vmem:[%s217 + $0x10] sm:$0xff] %v690
        %707 = vst [vmem:[%s217 + $0x18] sm:$0xff] %v691
        %708 = vst [vmem:[%s217 + $0x20] sm:$0xff] %v692
        %709 = vst [vmem:[%s217 + $0x28] sm:$0xff] %v693
        %710 = vst [vmem:[%s217 + $0x30] sm:$0xff] %v694
        %711 = vst [vmem:[%s217 + $0x38] sm:$0xff] %v695
        %712 = vst [vmem:[%s217 + $0x40] sm:$0xff] %v696
        %713 = vst [vmem:[%s217 + $0x48] sm:$0xff] %v697
        %714 = vst [vmem:[%s217 + $0x50] sm:$0xff] %v698
        %715 = vst [vmem:[%s217 + $0x58] sm:$0xff] %v699
        %716 = vst [vmem:[%s217 + $0x60] sm:$0xff] %v700
        %717 = vst [vmem:[%s217 + $0x68] sm:$0xff] %v701
        %718 = vst [vmem:[%s217 + $0x70] sm:$0xff] %v702
        %719 = vst [vmem:[%s217 + $0x78] sm:$0xff] %v703
        %s720 = sand.u32 %s112, 1
        %s721 = sand.u32 %s112, 1
        %s722 = smul.addr %s721, 128
        %s723 = scalar_lea.vmem [#allocation3], %s722
        // Predicated region
        $region60: #{speech_deconv.3} parent=54 // pred_check
          %p724 = pneg %p122
        $region61: #{speech_deconv.3} parent=54 // pred_check_branch
          %726 = sbr.rel (%p724) target = $region63
        $region62: #{speech_deconv.3} parent=54 // pred_region
          %s727 = smul.u32 4, %s15
          %s728 = smul.addr %s727, 8
          %s729 = scalar_lea.vmem %s4, %s728
          // Predicated region
          $region64: #{speech_deconv.3} parent=62 // pred_check
            _
          $region65: #{speech_deconv.3} parent=62 // pred_check_branch
            %731 = sbr.rel (0) target = $region67
          $region66: #{speech_deconv.3} parent=62 // pred_region
            // Predicated region
            $region68: #{speech_deconv.3} parent=66 // pred_check
              _
            $region69: #{speech_deconv.3} parent=66 // pred_check_branch
              %733 = sbr.rel (0) target = $region71
            $region70: #{speech_deconv.3} parent=66 // pred_region
              loop: start=0, step=1, limit=1
              $region72: #{speech_deconv.3} parent=70 // loop_pre_header
                _
              $region73: #{speech_deconv.3} parent=70 // loop_header
                %s735 = sphi 0, %s739
                %p736 = scmp.ge.s32.totalorder %s735, 1
                %s740 = sphi %s723, %s723
                %s741 = sphi %s729, %s729
              $region74: #{speech_deconv.3} parent=70 // loop_header_branch
                %738 = sbr.rel (%p736) target = $region78
              $region75: #{speech_deconv.3} parent=70 // loop_body
                %v742 = vld [vmem:[%s740] sm:$0xff]
                %743 = vst [vmem:[%s741] sm:$0xff] %v742
                %v744 = vld [vmem:[%s740 + $0x8] sm:$0xff]
                %745 = vst [vmem:[%s741 + $0x8] sm:$0xff] %v744
                %v746 = vld [vmem:[%s740 + $0x10] sm:$0xff]
                %747 = vst [vmem:[%s741 + $0x10] sm:$0xff] %v746
                %v748 = vld [vmem:[%s740 + $0x18] sm:$0xff]
                %749 = vst [vmem:[%s741 + $0x18] sm:$0xff] %v748
                %v750 = vld [vmem:[%s740 + $0x20] sm:$0xff]
                %751 = vst [vmem:[%s741 + $0x40] sm:$0xff] %v750
                %v752 = vld [vmem:[%s740 + $0x28] sm:$0xff]
                %753 = vst [vmem:[%s741 + $0x48] sm:$0xff] %v752
                %v754 = vld [vmem:[%s740 + $0x30] sm:$0xff]
                %755 = vst [vmem:[%s741 + $0x50] sm:$0xff] %v754
                %v756 = vld [vmem:[%s740 + $0x38] sm:$0xff]
                %757 = vst [vmem:[%s741 + $0x58] sm:$0xff] %v756
                %v758 = vld [vmem:[%s740 + $0x40] sm:$0xff]
                %759 = vst [vmem:[%s741 + $0x80] sm:$0xff] %v758
                %v760 = vld [vmem:[%s740 + $0x48] sm:$0xff]
                %761 = vst [vmem:[%s741 + $0x88] sm:$0xff] %v760
                %v762 = vld [vmem:[%s740 + $0x50] sm:$0xff]
                %763 = vst [vmem:[%s741 + $0x90] sm:$0xff] %v762
                %v764 = vld [vmem:[%s740 + $0x58] sm:$0xff]
                %765 = vst [vmem:[%s741 + $0x98] sm:$0xff] %v764
                %v766 = vld [vmem:[%s740 + $0x60] sm:$0xff]
                %767 = vst [vmem:[%s741 + $0xc0] sm:$0xff] %v766
                %v768 = vld [vmem:[%s740 + $0x68] sm:$0xff]
                %769 = vst [vmem:[%s741 + $0xc8] sm:$0xff] %v768
                %v770 = vld [vmem:[%s740 + $0x70] sm:$0xff]
                %771 = vst [vmem:[%s741 + $0xd0] sm:$0xff] %v770
                %v772 = vld [vmem:[%s740 + $0x78] sm:$0xff]
                %773 = vst [vmem:[%s741 + $0xd8] sm:$0xff] %v772
              $region76: #{speech_deconv.3} parent=70 // loop_footer
                %s739 = sadd.s32 1, %s735
              $region77: #{speech_deconv.3} parent=70 // loop_footer_branch
                %734 = sbr.rel target = $region73
              $region78: #{speech_deconv.3} parent=70 // loop_exit
                _
            $region71: #{speech_deconv.3} parent=66 // pred_fallthru
              _
            // Predicated region
            $region79: #{speech_deconv.3} parent=66 // pred_check
              _
            $region80: #{speech_deconv.3} parent=66 // pred_check_branch
              %775 = sbr.rel target = $region82
            $region81: #{speech_deconv.3} parent=66 // pred_region
              _
            $region82: #{speech_deconv.3} parent=66 // pred_fallthru
              _
          $region67: #{speech_deconv.3} parent=62 // pred_fallthru
            _
          %776 = vnop
        $region63: #{speech_deconv.3} parent=54 // pred_fallthru
          _
      $region55: #{speech_deconv.3} parent=5 // pred_fallthru
        _
      %p777 = scmp.le.s32.totalorder 2, %s10
      // Predicated region
      $region83: #{speech_deconv.3} parent=5 // pred_check
        %p778 = pneg %p777
      $region84: #{speech_deconv.3} parent=5 // pred_check_branch
        %780 = sbr.rel (%p778) target = $region86
      $region85: #{speech_deconv.3} parent=5 // pred_region
        %s781 = ssub.s32 %s10, 2
        // Predicated region
        $region87: #{speech_deconv.3} parent=85 // pred_check
          %p782 = pneg %p128
        $region88: #{speech_deconv.3} parent=85 // pred_check_branch
          %784 = sbr.rel (%p782) target = $region90
        $region89: #{speech_deconv.3} parent=85 // pred_region
          %s785 = sand.u32 %s113, 1
          %s786 = sand.u32 %s113, 1
          %s787 = smul.addr %s786, 128
          %s788 = scalar_lea.vmem [#allocation3], %s787
        $region90: #{speech_deconv.3} parent=85 // pred_fallthru
          _
      $region86: #{speech_deconv.3} parent=5 // pred_fallthru
        _
    $region6: #{speech_deconv.3} parent=1 // loop_footer
      %s14 = sadd.s32 1, %s10
    $region7: #{speech_deconv.3} parent=1 // loop_footer_branch
      %9 = sbr.rel target = $region3
    $region8: #{speech_deconv.3} parent=1 // loop_exit
      _

</llo_original>
